<compile_context>
chip_gen: v5e
topology: v5e:2x2
jax: 0.10.0
libtpu: 0.0.40
codegen_flags: <defaults>
</compile_context>

<pallas_src>
import functools

import jax
import jax.numpy as jnp
from jax.experimental import pallas as pl
from jax.experimental.pallas import tpu as pltpu


# ----------------------------- tunables --------------------------------------
_LANE = 128                             # lane quantum (last dim)
_BLOCK_CAP_BYTES = 2 * 1024 * 1024      # per-block cap on the LANE-PADDED size;
                                        # in+out double-buffered => ~8 MiB VMEM
_BLOCK_FLOOR_BYTES = 512 * 1024         # never shrink blocks below this just to
                                        # add grid steps (>=85% of HBM roofline)
_VMEM_LIMIT_BYTES = 32 * 1024 * 1024    # scoped VMEM limit (safe on v5e/v6e/v7x)
_MIN_PALLAS_BYTES = 1024 * 1024         # below this, a standalone transpose kernel
                                        # is pure launch/DMA overhead -> jnp fallback
_MIN_GRID_STEPS = 16                    # target pipeline depth / 2-TC sharding
_MAX_UNROLL_GROUPS = 16                 # statically unroll the sub-slab loop up to here


def _round_up(v: int, m: int) -> int:
    return ((v + m - 1) // m) * m


def _sublane_quantum(itemsize: int) -> int:
    # Sub-32-bit dtypes pack along sublanes: the native sublane tile is
    # 8 * (4 // itemsize) rows (f32: 8, bf16/f16: 16, int8/fp8: 32).
    return 8 * (4 // itemsize)


# ------------------------------ kernels ---------------------------------------
def _whole_block_kernel(x_ref, o_ref):
    # x block (1, tn, tp, C) -> o block (1, tp, tn, C).
    # Used only when tn is too small / irregular for the grouped sub-slab loop
    # (blocks are then small, so the whole-block relayout is cheap anyway).
    o_ref[0] = jnp.swapaxes(x_ref[0], 0, 1)


def _grouped_kernel(x_ref, o_ref, *, group: int, n_groups: int):
    # Transpose the block in sublane-quantum sub-slabs:
    #   load  (group, tp, C)  ->  store (tp, group, C)
    # so every store covers full, aligned sublane groups (no per-sublane masked
    # stores, no whole-block live set).  The global N<->P permutation is carried
    # by the BlockSpec index maps; only the small tile is shuffled here.
    if n_groups <= _MAX_UNROLL_GROUPS:
        # Short trip count: fully unrolled with static offsets (best scheduler
        # visibility, no dynamic-index lowering involved).
        for g in range(n_groups):
            n0 = g * group
            tile = x_ref[0, n0:n0 + group, :, :]
            o_ref[0, :, n0:n0 + group, :] = jnp.swapaxes(tile, 0, 1)
    else:
        # Long trip count: real loop bounds the live range / code size.
        def body(g, carry):
            n0 = pl.multiple_of(g * group, group)
            tile = x_ref[0, pl.ds(n0, group), :, :]
            o_ref[0, :, pl.ds(n0, group), :] = jnp.swapaxes(tile, 0, 1)
            return carry

        jax.lax.fori_loop(0, n_groups, body, 0, unroll=False)


# --------------------------- tile selection -----------------------------------
def _legal_tiles(dim: int, quantum: int):
    """Tile sizes along `dim` keeping blocks layout-legal: multiples of the
    dtype sublane quantum that divide `dim` exactly, plus the full dim (always
    exempt from the divisibility rule)."""
    tiles = [t for t in range(quantum, dim + 1, quantum) if dim % t == 0]
    if dim not in tiles:
        tiles.append(dim)
    return tiles


def _pick_tiles(batch: int, n: int, p: int, c: int, itemsize: int):
    """Pick (tn, tp) maximizing the (lane/sublane-PADDED) block size subject to
    the VMEM cap, with a block-size floor so the grid-step target never shrinks
    blocks into step-overhead territory.  Returns None if nothing fits."""
    q = _sublane_quantum(itemsize)
    bytes_per = _round_up(c, _LANE) * itemsize          # padded bytes per (n, p) element
    hard_cap = _BLOCK_CAP_BYTES // bytes_per            # VMEM cap on tn_pad * tp_pad
    floor = max(q * q, _BLOCK_FLOOR_BYTES // bytes_per)
    step_cap = (batch * _round_up(n, q) * _round_up(p, q)) // _MIN_GRID_STEPS
    cap = min(hard_cap, max(step_cap, floor))

    best = None
    for tn in _legal_tiles(n, q):
        for tp in _legal_tiles(p, q):
            padded = _round_up(tn, q) * _round_up(tp, q)
            if padded > cap:
                continue
            score = (padded, min(tn, tp))               # biggest block, then balanced
            if best is None or score > best[0]:
                best = (score, tn, tp)
    if best is None:
        return None
    return best[1], best[2]


# ------------------------------ pallas_call -----------------------------------
def _swap_mid_axes_4d(x: jax.Array):
    """Pallas kernel for swapaxes(x, 1, 2) on a 4D array.  Returns None if no
    layout-legal tiling fits the VMEM budget."""
    B, N, P, C = x.shape
    itemsize = jnp.dtype(x.dtype).itemsize
    tiles = _pick_tiles(B, N, P, C, itemsize)
    if tiles is None:
        return None
    tn, tp = tiles

    group = _sublane_quantum(itemsize)
    if tn % group == 0 and tn // group > 1:
        kernel = functools.partial(_grouped_kernel, group=group, n_groups=tn // group)
    else:
        kernel = _whole_block_kernel

    total_bytes = x.size * itemsize
    return pl.pallas_call(
        kernel,
        out_shape=jax.ShapeDtypeStruct((B, P, N, C), x.dtype),
        grid_spec=pltpu.PrefetchScalarGridSpec(
            num_scalar_prefetch=0,
            # Innermost grid axis walks the N blocks -> output writeback DMAs
            # move sequentially along the output's N dimension.
            grid=(B, P // tp, N // tn),
            in_specs=[pl.BlockSpec((1, tn, tp, C), lambda b, j, i: (b, i, j, 0))],
            out_specs=pl.BlockSpec((1, tp, tn, C), lambda b, j, i: (b, j, i, 0)),
        ),
        compiler_params=pltpu.CompilerParams(
            dimension_semantics=("parallel", "parallel", "parallel"),
            vmem_limit_bytes=_VMEM_LIMIT_BYTES,
        ),
        cost_estimate=pl.CostEstimate(
            flops=0, transcendentals=0, bytes_accessed=2 * total_bytes),
    )(x)


# ------------------------------- wrapper --------------------------------------
def swap_axes_pallas(x: jax.Array, a: int, b: int) -> jax.Array:
    """torch.swapaxes(x, a, b) with a Pallas TPU fast path for the MaxVit case."""
    ndim = x.ndim
    a = a % ndim
    b = b % ndim
    if a == b:
        return x
    if a > b:
        a, b = b, a

    # The Pallas kernel covers the configuration MaxVit actually uses: a 4D
    # activation with the two middle axes swapped (SwapAxes(-2, -3)).  Anything
    # else is left to XLA, which can usually fold a bare transpose for free.
    if ndim != 4 or (a, b) != (1, 2):
        return jnp.swapaxes(x, a, b)

    itemsize = jnp.dtype(x.dtype).itemsize
    if (x.dtype == jnp.bool_ or itemsize not in (1, 2, 4)
            or x.size * itemsize < _MIN_PALLAS_BYTES):
        return jnp.swapaxes(x, 1, 2)

    y = _swap_mid_axes_4d(x)
    if y is None:  # no layout-legal tiling fits the VMEM budget
        return jnp.swapaxes(x, 1, 2)
    return y


class SwapAxes:
    """JAX/Pallas mirror of the PyTorch SwapAxes module (no parameters)."""

    def __init__(self, a: int, b: int) -> None:
        self.a = a
        self.b = b

    def __call__(self, x: jax.Array) -> jax.Array:
        return swap_axes_pallas(x, self.a, self.b)


# -------------------------------- test ----------------------------------------
if __name__ == "__main__":
    key = jax.random.PRNGKey(0)
    k1, k2, k3 = jax.random.split(key, 3)
    mod = SwapAxes(-2, -3)  # the axes MaxVit uses

    # 1) f32, C=128: exercises the grouped (8-row sub-slab) Pallas path.
    x1 = jax.random.normal(k1, (2, 64, 64, 128), dtype=jnp.float32)
    y1 = jax.block_until_ready(mod(x1))
    r1 = jnp.swapaxes(x1, -2, -3)
    assert y1.shape == r1.shape and y1.dtype == r1.dtype
    assert jnp.array_equal(y1, r1), "f32 mismatch vs jnp.swapaxes"

    # 2) bf16, C=64: native bf16 tiling (16-row sublane quantum), no wrapper repack.
    x2 = jax.random.normal(k2, (2, 64, 96, 64), dtype=jnp.bfloat16)
    y2 = jax.block_until_ready(mod(x2))
    r2 = jnp.swapaxes(x2, -2, -3)
    assert y2.shape == r2.shape and y2.dtype == r2.dtype
    assert jnp.array_equal(y2, r2), "bf16 mismatch vs jnp.swapaxes"

    # 3) awkward / tiny shape -> jnp fallback (must still be correct).
    x3 = jax.random.normal(k3, (2, 5, 7, 33), dtype=jnp.float32)
    y3 = jax.block_until_ready(mod(x3))
    r3 = jnp.swapaxes(x3, -2, -3)
    assert jnp.array_equal(y3, r3), "fallback mismatch vs jnp.swapaxes"

    print("KERNEL_OK")
</pallas_src>

<mosaic_0001>
module attributes {stable_mosaic.version = 11 : i64} {
  func.func @_grouped_kernel(%arg0: i32, %arg1: i32, %arg2: i32, %arg3: memref<1x32x32x128xf32, #tpu.memory_space<vmem>>, %arg4: memref<1x32x32x128xf32, #tpu.memory_space<vmem>>) attributes {dimension_semantics = [#tpu.dimension_semantics<parallel>, #tpu.dimension_semantics<parallel>, #tpu.dimension_semantics<parallel>], iteration_bounds = array<i64: 2, 2, 2>, scalar_prefetch = 0 : i64, scratch_operands = 0 : i64, tpu.core_type = #tpu.core_type<tc>, window_params = [{transform_indices = @transform_0, window_bounds = array<i64: 1, 32, 32, 128>}, {transform_indices = @transform_1, window_bounds = array<i64: 1, 32, 32, 128>}]} {
    %c0 = arith.constant 0 : index
    %c0_0 = arith.constant 0 : index
    %c0_1 = arith.constant 0 : index
    %c0_2 = arith.constant 0 : index
    %0 = vector.load %arg3[%c0, %c0_0, %c0_1, %c0_2] : memref<1x32x32x128xf32, #tpu.memory_space<vmem>>, vector<1x8x32x128xf32>
    %1 = vector.shape_cast %0 : vector<1x8x32x128xf32> to vector<8x32x128xf32>
    %2 = tpu.transpose %1, [1, 0, 2] : vector<8x32x128xf32> -> vector<32x8x128xf32>
    %c0_3 = arith.constant 0 : index
    %c0_4 = arith.constant 0 : index
    %c0_5 = arith.constant 0 : index
    %c0_6 = arith.constant 0 : index
    %3 = vector.load %arg4[%c0_3, %c0_4, %c0_5, %c0_6] : memref<1x32x32x128xf32, #tpu.memory_space<vmem>>, vector<1x32x8x128xf32>
    %4 = vector.shape_cast %3 : vector<1x32x8x128xf32> to vector<32x8x128xf32>
    %5 = vector.shape_cast %2 : vector<32x8x128xf32> to vector<1x32x8x128xf32>
    tpu.vector_store %arg4[%c0_3, %c0_4, %c0_5, %c0_6], %5 {strides = array<i32>} : memref<1x32x32x128xf32, #tpu.memory_space<vmem>>, vector<1x32x8x128xf32>,
    %c0_7 = arith.constant 0 : index
    %c8 = arith.constant 8 : index
    %c0_8 = arith.constant 0 : index
    %c0_9 = arith.constant 0 : index
    %6 = vector.load %arg3[%c0_7, %c8, %c0_8, %c0_9] : memref<1x32x32x128xf32, #tpu.memory_space<vmem>>, vector<1x8x32x128xf32>
    %7 = vector.shape_cast %6 : vector<1x8x32x128xf32> to vector<8x32x128xf32>
    %8 = tpu.transpose %7, [1, 0, 2] : vector<8x32x128xf32> -> vector<32x8x128xf32>
    %c0_10 = arith.constant 0 : index
    %c0_11 = arith.constant 0 : index
    %c8_12 = arith.constant 8 : index
    %c0_13 = arith.constant 0 : index
    %9 = vector.load %arg4[%c0_10, %c0_11, %c8_12, %c0_13] : memref<1x32x32x128xf32, #tpu.memory_space<vmem>>, vector<1x32x8x128xf32>
    %10 = vector.shape_cast %9 : vector<1x32x8x128xf32> to vector<32x8x128xf32>
    %11 = vector.shape_cast %8 : vector<32x8x128xf32> to vector<1x32x8x128xf32>
    tpu.vector_store %arg4[%c0_10, %c0_11, %c8_12, %c0_13], %11 {strides = array<i32>} : memref<1x32x32x128xf32, #tpu.memory_space<vmem>>, vector<1x32x8x128xf32>,
    %c0_14 = arith.constant 0 : index
    %c16 = arith.constant 16 : index
    %c0_15 = arith.constant 0 : index
    %c0_16 = arith.constant 0 : index
    %12 = vector.load %arg3[%c0_14, %c16, %c0_15, %c0_16] : memref<1x32x32x128xf32, #tpu.memory_space<vmem>>, vector<1x8x32x128xf32>
    %13 = vector.shape_cast %12 : vector<1x8x32x128xf32> to vector<8x32x128xf32>
    %14 = tpu.transpose %13, [1, 0, 2] : vector<8x32x128xf32> -> vector<32x8x128xf32>
    %c0_17 = arith.constant 0 : index
    %c0_18 = arith.constant 0 : index
    %c16_19 = arith.constant 16 : index
    %c0_20 = arith.constant 0 : index
    %15 = vector.load %arg4[%c0_17, %c0_18, %c16_19, %c0_20] : memref<1x32x32x128xf32, #tpu.memory_space<vmem>>, vector<1x32x8x128xf32>
    %16 = vector.shape_cast %15 : vector<1x32x8x128xf32> to vector<32x8x128xf32>
    %17 = vector.shape_cast %14 : vector<32x8x128xf32> to vector<1x32x8x128xf32>
    tpu.vector_store %arg4[%c0_17, %c0_18, %c16_19, %c0_20], %17 {strides = array<i32>} : memref<1x32x32x128xf32, #tpu.memory_space<vmem>>, vector<1x32x8x128xf32>,
    %c0_21 = arith.constant 0 : index
    %c24 = arith.constant 24 : index
    %c0_22 = arith.constant 0 : index
    %c0_23 = arith.constant 0 : index
    %18 = vector.load %arg3[%c0_21, %c24, %c0_22, %c0_23] : memref<1x32x32x128xf32, #tpu.memory_space<vmem>>, vector<1x8x32x128xf32>
    %19 = vector.shape_cast %18 : vector<1x8x32x128xf32> to vector<8x32x128xf32>
    %20 = tpu.transpose %19, [1, 0, 2] : vector<8x32x128xf32> -> vector<32x8x128xf32>
    %c0_24 = arith.constant 0 : index
    %c0_25 = arith.constant 0 : index
    %c24_26 = arith.constant 24 : index
    %c0_27 = arith.constant 0 : index
    %21 = vector.load %arg4[%c0_24, %c0_25, %c24_26, %c0_27] : memref<1x32x32x128xf32, #tpu.memory_space<vmem>>, vector<1x32x8x128xf32>
    %22 = vector.shape_cast %21 : vector<1x32x8x128xf32> to vector<32x8x128xf32>
    %23 = vector.shape_cast %20 : vector<32x8x128xf32> to vector<1x32x8x128xf32>
    tpu.vector_store %arg4[%c0_24, %c0_25, %c24_26, %c0_27], %23 {strides = array<i32>} : memref<1x32x32x128xf32, #tpu.memory_space<vmem>>, vector<1x32x8x128xf32>,
    return
  }
  func.func @transform_0(%arg0: i32, %arg1: i32, %arg2: i32) -> (i32, i32, i32, i32) {
    %c0_i32 = arith.constant 0 : i32
    %c0_i32_0 = arith.constant 0 : i32
    return %arg0, %arg2, %arg1, %c0_i32 : i32, i32, i32, i32
  }
  func.func @transform_1(%arg0: i32, %arg1: i32, %arg2: i32) -> (i32, i32, i32, i32) {
    %c0_i32 = arith.constant 0 : i32
    %c0_i32_0 = arith.constant 0 : i32
    return %arg0, %arg1, %arg2, %c0_i32 : i32, i32, i32, i32
  }
}

</mosaic_0001>

<llo_original>
// kernel: tpu_custom_call.1
$region0: #{tpu_custom_call.1}
  #allocation0 [shape = 'u32[]', space=smem, size = 0x4, offset = 0x4, fixed_abs, tag = 'smem constant byte address 0x4 - core index']
  #allocation1 [shape = 'u32[72,128]{1,0:T(1,128)}', space=vmem, size = 0x9000, scoped, tag = 'internal scratch']
  #allocation6 [shape = 's32[]', space=sflag, size = 0x4, offset = 0, fixed_abs, tag = 'sflag constant byte address 0x0 - dummy sync flag']
  #allocation8 [shape = 's32[]', space=sflag, size = 0x4, offset = 0, fixed_abs, tag = 'sflag constant byte address 0x0 - dummy sync flag']
  %s0 = inlined_call_operand.hbm [shape: f32[2,64,64,128], index: 0, kind: input, shape index: {}]
  %s1 = inlined_call_operand.hbm [shape: f32[2,64,64,128], index: 1, kind: output, shape index: {}]
  %s2 = sld [smem:[#allocation0]]
  $region41: #{tpu_custom_call.1} parent=0
    _
  %s4 = ssub.s32 1, %s2
  %s5 = scalar_select 0, %s4, %s2
  $region1: #{tpu_custom_call.1} parent=0
    #allocation2 [shape = 'u8[1048576]{0}', space=vmem, size = 0x100000, scoped, tag = 'input window, operand 0']
    #allocation3 [shape = 's32[2]{0}', space=sflag, size = 0x8, scoped, tag = 'scoped memory for tpu_custom_call.1']
    #allocation4 [shape = 's32[2]{0}', space=sflag, size = 0x8, scoped, tag = 'scoped memory for tpu_custom_call.1']
    #allocation5 [shape = 'u8[1048576]{0}', space=vmem, size = 0x100000, scoped, tag = 'output window, operand 0']
    %6 = vsyncpa [#allocation3], 0
    %s7 = scalar_lea.sflag [#allocation3], 1
    %8 = vsyncpa %s7, 0
    %9 = vsyncpa [#allocation4], 0
    %s10 = scalar_lea.sflag [#allocation4], 1
    %11 = vsyncpa %s10, 0
    loop: start=0, step=1, limit=10
    $region2: #{tpu_custom_call.1} parent=1 // loop_pre_header
      _
    $region3: #{tpu_custom_call.1} parent=1 // loop_header
      %s13 = sphi 0, %s17
      %p14 = scmp.ge.s32.totalorder %s13, 10
      %s20 = sphi 0, %s39
      %s21 = sphi 0, %s35
      %s22 = sphi 0, %s31
      %s23 = sphi 0, %s20
      %s24 = sphi 0, %s21
      %s25 = sphi 0, %s22
      %s26 = sphi 0, %s23
      %s27 = sphi 0, %s24
      %s28 = sphi 0, %s25
      %s46 = sphi 0, %s48
      %s49 = sphi 0, %s46
      %s50 = sphi 0, %s49
      %s66 = sphi 0, %s50
      %s76 = sphi 0, %s78
      %s79 = sphi 0, %s76
      %s80 = sphi 0, %s79
      %s96 = sphi 0, %s80
    $region4: #{tpu_custom_call.1} parent=1 // loop_header_branch
      %16 = sbr.rel (%p14) target = $region8
    $region5: #{tpu_custom_call.1} parent=1 // loop_body
      %s18 = ssub.s32 %s13, 1
      %s19 = ssub.s32 %s13, 2
      %s29 = sadd.s32 1, %s22
      %p30 = scmp.ge.s32.totalorder %s29, 2
      %s31 = scalar_select %p30, 0, %s29
      %s32 = sadd.s32 1, %s21
      %s33 = scalar_select %p30, %s32, %s21
      %p34 = scmp.ge.s32.totalorder %s33, 2
      %s35 = scalar_select %p34, 0, %s33
      %s36 = sadd.s32 1, %s20
      %s37 = scalar_select %p34, %s36, %s20
      %p38 = scmp.ge.s32.totalorder %s37, 2
      %s39 = scalar_select %p38, 0, %s37
      %s40 = ssub.s32 %s20, %s39
      %s41 = ssub.s32 %s22, %s31
      %s42 = sor.u32 %s40, %s41
      %s43 = ssub.s32 %s21, %s35
      %s44 = sor.u32 %s42, %s43
      %p45 = scmp.eq.s32.totalorder %s44, 0
      %s47 = sadd.s32 %s46, 1
      %s48 = scalar_select %p45, %s46, %s47
      %p51 = pneg %p45
      %p52 = scmp.eq.s32.totalorder %s13, 7
      %p53 = por %p51, %p52
      %p54 = scmp.ne.s32.totalorder %s46, %s49
      %p55 = scmp.eq.s32.totalorder %s13, 0
      %p56 = por %p54, %p55
      %p57 = scmp.ne.s32.totalorder %s46, %s49
      %p58 = scmp.eq.s32.totalorder %s18, 7
      %p59 = por %p57, %p58
      %p60 = scmp.ne.s32.totalorder %s49, %s50
      %p61 = scmp.eq.s32.totalorder %s18, 0
      %p62 = por %p60, %p61
      %p63 = scmp.ne.s32.totalorder %s49, %s50
      %p64 = scmp.eq.s32.totalorder %s19, 7
      %p65 = por %p63, %p64
      %p67 = scmp.ne.s32.totalorder %s50, %s66
      %p68 = scmp.eq.s32.totalorder %s19, 0
      %p69 = por %p67, %p68
      %s70 = ssub.s32 %s20, %s39
      %s71 = ssub.s32 %s21, %s35
      %s72 = sor.u32 %s70, %s71
      %s73 = ssub.s32 %s22, %s31
      %s74 = sor.u32 %s72, %s73
      %p75 = scmp.eq.s32.totalorder %s74, 0
      %s77 = sadd.s32 %s76, 1
      %s78 = scalar_select %p75, %s76, %s77
      %p81 = pneg %p75
      %p82 = scmp.eq.s32.totalorder %s13, 7
      %p83 = por %p81, %p82
      %p84 = scmp.ne.s32.totalorder %s76, %s79
      %p85 = scmp.eq.s32.totalorder %s13, 0
      %p86 = por %p84, %p85
      %p87 = scmp.ne.s32.totalorder %s76, %s79
      %p88 = scmp.eq.s32.totalorder %s18, 7
      %p89 = por %p87, %p88
      %p90 = scmp.ne.s32.totalorder %s79, %s80
      %p91 = scmp.eq.s32.totalorder %s18, 0
      %p92 = por %p90, %p91
      %p93 = scmp.ne.s32.totalorder %s79, %s80
      %p94 = scmp.eq.s32.totalorder %s19, 7
      %p95 = por %p93, %p94
      %p97 = scmp.ne.s32.totalorder %s80, %s96
      %p98 = scmp.eq.s32.totalorder %s19, 0
      %p99 = por %p97, %p98
      %p100 = scmp.le.s32.totalorder 1, %s13
      %p101 = scmp.lt.s32.totalorder %s13, 9
      %p102 = pnand %p100, %p101
      %p103 = pneg %p102
      // Predicated region
      $region9: #{tpu_custom_call.1} parent=5 // pred_check
        _
      $region10: #{tpu_custom_call.1} parent=5 // pred_check_branch
        %105 = sbr.rel (%p102) target = $region12
      $region11: #{tpu_custom_call.1} parent=5 // pred_region
        %s106 = ssub.s32 %s13, 1
      $region12: #{tpu_custom_call.1} parent=5 // pred_fallthru
        _
      %p107 = scmp.lt.s32.totalorder %s13, 8
      // Predicated region
      $region13: #{tpu_custom_call.1} parent=5 // pred_check
        %p108 = pneg %p107
      $region14: #{tpu_custom_call.1} parent=5 // pred_check_branch
        %110 = sbr.rel (%p108) target = $region16
      $region15: #{tpu_custom_call.1} parent=5 // pred_region
        // Predicated region
        $region17: #{tpu_custom_call.1} parent=15 // pred_check
          %p111 = pneg %p56
        $region18: #{tpu_custom_call.1} parent=15 // pred_check_branch
          %113 = sbr.rel (%p111) target = $region20
        $region19: #{tpu_custom_call.1} parent=15 // pred_region
          #allocation7 [shape = 'u32[6]{0}', space=smem, size = 0x18, scoped, tag = 'DMA stride descriptor']
          %s114 = sand.u32 %s46, 1
          %s115 = scalar_lea.sflag [#allocation3], %s114
          %s116 = sand.u32 %s46, 1
          %s117 = smul.addr %s116, 1024
          %s118 = scalar_lea.vmem [#allocation2], %s117
          %s119 = smul.u32 32, %s22
          %s120 = smul.u32 4, %s21
          %122 = vsyncadd %s115, 0
          %s123 = smul.addr %s119, 8
          %s124 = sadd.s32 %s120, %s123
          %s125 = smul.addr %s20, 512
          %s126 = sadd.s32 %s124, %s125
          %s127 = smul.addr %s126, 8
          %s128 = scalar_lea.hbm %s0, %s127
          %s130 = sshll.u32 1, 14
          %s131 = sxor.u32 4294967295, %s130
          %s133 = sld [smem:[#allocation0]]
          %s134 = sadd.s32 2, %s133
          %s136 = sshll.u32 7, 26
          %s137 = sxor.u32 4294967295, %s136
          %s138 = sand.u32 0, %s137
          %s139 = sshll.u32 %s134, 26
          %s140 = sor.u32 %s138, %s139
          %s141 = sshll.u32 %s128, 4
          %s142 = int_to_ptr.hbm [resolvable:$true] %s141
          %s143 = sshll.u32 %s118, 4
          %s144 = int_to_ptr.vmem [resolvable:$true] %s143
          %150 = sst [smem:[#allocation7]] 1024
          %s151 = scalar_lea.smem [#allocation7], 1
          %152 = sst [smem:[%s151]] 512
          %s153 = scalar_lea.smem [#allocation7], 2
          %154 = sst [smem:[%s153]] 4
          %s155 = scalar_lea.smem [#allocation7], 3
          %156 = sst [smem:[%s155]] 128
          %s157 = scalar_lea.smem [#allocation7], 4
          %158 = sst [smem:[%s157]] 128
          %s159 = scalar_lea.smem [#allocation7], 5
          %160 = sst [smem:[%s159]] 8
          %162 = dma.general %s142, 16384, %s144, %s115, [#allocation6], [#allocation7], %s140, 0
        $region20: #{tpu_custom_call.1} parent=15 // pred_fallthru
          _
      $region16: #{tpu_custom_call.1} parent=5 // pred_fallthru
        _
      %p163 = scmp.le.s32.totalorder 1, %s13
      %p164 = scmp.lt.s32.totalorder %s13, 9
      %p165 = pnand %p163, %p164
      %p166 = pneg %p165
      // Predicated region
      $region21: #{tpu_custom_call.1} parent=5 // pred_check
        _
      $region22: #{tpu_custom_call.1} parent=5 // pred_check_branch
        %168 = sbr.rel (%p165) target = $region24
      $region23: #{tpu_custom_call.1} parent=5 // pred_region
        %s169 = ssub.s32 %s13, 1
        %s170 = sand.u32 %s49, 1
        %s171 = scalar_lea.sflag [#allocation3], %s170
        %s172 = sand.u32 %s49, 1
        %s173 = smul.addr %s172, 1024
        %s174 = scalar_lea.vmem [#allocation2], %s173
        // Predicated region
        $region25: #{tpu_custom_call.1} parent=23 // pred_check
          %p175 = pneg %p62
        $region26: #{tpu_custom_call.1} parent=23 // pred_check_branch
          %177 = sbr.rel (%p175) target = $region28
        $region27: #{tpu_custom_call.1} parent=23 // pred_region
          %179 = dma.done %s171, 16384
        $region28: #{tpu_custom_call.1} parent=23 // pred_fallthru
          _
        %s180 = sand.u32 %s49, 1
        %s181 = scalar_lea.sflag [#allocation3], %s180
        %s182 = sand.u32 %s49, 1
        %s183 = smul.addr %s182, 1024
        %s184 = scalar_lea.vmem [#allocation2], %s183
        %p185 = pneg %p62
        %p186 = pneg %p59
        %p187 = pneg %p92
        %p188 = pneg %p89
        %s189 = sand.u32 %s79, 1
        %s190 = scalar_lea.sflag [#allocation4], %s189
        %s191 = sand.u32 %s79, 1
        %s192 = smul.addr %s191, 1024
        %s193 = scalar_lea.vmem [#allocation5], %s192
        %s194 = smul.u32 32, %s25
        %s195 = smul.u32 4, %s24
        %s196 = smul.u32 32, %s24
        %s197 = smul.u32 4, %s25
        %v198 = vld [vmem:[%s174] sm:$0xff]
        %v199 = vld [vmem:[%s174 + $0x8] sm:$0xff]
        %v200 = vld [vmem:[%s174 + $0x10] sm:$0xff]
        %v201 = vld [vmem:[%s174 + $0x18] sm:$0xff]
        %v202 = vld [vmem:[%s174 + $0x20] sm:$0xff]
        %v203 = vld [vmem:[%s174 + $0x28] sm:$0xff]
        %v204 = vld [vmem:[%s174 + $0x30] sm:$0xff]
        %v205 = vld [vmem:[%s174 + $0x38] sm:$0xff]
        %v206 = vld [vmem:[%s174 + $0x40] sm:$0xff]
        %v207 = vld [vmem:[%s174 + $0x48] sm:$0xff]
        %v208 = vld [vmem:[%s174 + $0x50] sm:$0xff]
        %v209 = vld [vmem:[%s174 + $0x58] sm:$0xff]
        %v210 = vld [vmem:[%s174 + $0x60] sm:$0xff]
        %v211 = vld [vmem:[%s174 + $0x68] sm:$0xff]
        %v212 = vld [vmem:[%s174 + $0x70] sm:$0xff]
        %v213 = vld [vmem:[%s174 + $0x78] sm:$0xff]
        %v214 = vld [vmem:[%s174 + $0x80] sm:$0xff]
        %v215 = vld [vmem:[%s174 + $0x88] sm:$0xff]
        %v216 = vld [vmem:[%s174 + $0x90] sm:$0xff]
        %v217 = vld [vmem:[%s174 + $0x98] sm:$0xff]
        %v218 = vld [vmem:[%s174 + $0xa0] sm:$0xff]
        %v219 = vld [vmem:[%s174 + $0xa8] sm:$0xff]
        %v220 = vld [vmem:[%s174 + $0xb0] sm:$0xff]
        %v221 = vld [vmem:[%s174 + $0xb8] sm:$0xff]
        %v222 = vld [vmem:[%s174 + $0xc0] sm:$0xff]
        %v223 = vld [vmem:[%s174 + $0xc8] sm:$0xff]
        %v224 = vld [vmem:[%s174 + $0xd0] sm:$0xff]
        %v225 = vld [vmem:[%s174 + $0xd8] sm:$0xff]
        %v226 = vld [vmem:[%s174 + $0xe0] sm:$0xff]
        %v227 = vld [vmem:[%s174 + $0xe8] sm:$0xff]
        %v228 = vld [vmem:[%s174 + $0xf0] sm:$0xff]
        %v229 = vld [vmem:[%s174 + $0xf8] sm:$0xff]
        %v230 = vrot.slane %v206, 4
        %vm231 = vcmask 1047556
        %v232 = vsel %vm231, %v230, %v198
        %v233 = vrot.slane %v198, 4
        %v234 = vsel %vm231, %v206, %v233
        %v236 = vunpack.c.l.s4 1983009808
        %v237 = vunpack.c.0.s8 %v236
        %v238 = vperm.slane %v232, %v237
        %v240 = vunpack.c.l.s4 1983009808
        %v241 = vunpack.c.0.s8 %v240
        %v242 = vperm.slane %v234, %v241
        %v243 = vrot.slane %v210, 4
        %v244 = vsel %vm231, %v243, %v202
        %v245 = vrot.slane %v202, 4
        %v246 = vsel %vm231, %v210, %v245
        %v248 = vunpack.c.l.s4 1983009808
        %v249 = vunpack.c.0.s8 %v248
        %v250 = vperm.slane %v244, %v249
        %v252 = vunpack.c.l.s4 1983009808
        %v253 = vunpack.c.0.s8 %v252
        %v254 = vperm.slane %v246, %v253
        %v255 = vrot.slane %v222, 4
        %v256 = vsel %vm231, %v255, %v214
        %v257 = vrot.slane %v214, 4
        %v258 = vsel %vm231, %v222, %v257
        %v260 = vunpack.c.l.s4 1983009808
        %v261 = vunpack.c.0.s8 %v260
        %v262 = vperm.slane %v256, %v261
        %v264 = vunpack.c.l.s4 1983009808
        %v265 = vunpack.c.0.s8 %v264
        %v266 = vperm.slane %v258, %v265
        %v267 = vrot.slane %v226, 4
        %v268 = vsel %vm231, %v267, %v218
        %v269 = vrot.slane %v218, 4
        %v270 = vsel %vm231, %v226, %v269
        %v272 = vunpack.c.l.s4 1983009808
        %v273 = vunpack.c.0.s8 %v272
        %v274 = vperm.slane %v268, %v273
        %v276 = vunpack.c.l.s4 1983009808
        %v277 = vunpack.c.0.s8 %v276
        %v278 = vperm.slane %v270, %v277
        %v279 = vrot.slane %v250, 4
        %v280 = vsel %vm231, %v279, %v238
        %v281 = vrot.slane %v238, 4
        %v282 = vsel %vm231, %v250, %v281
        %v284 = vunpack.c.l.s4 1934713408
        %v285 = vunpack.c.0.s8 %v284
        %v286 = vperm.slane %v280, %v285
        %v288 = vunpack.c.l.s4 1934713408
        %v289 = vunpack.c.0.s8 %v288
        %v290 = vperm.slane %v282, %v289
        %v291 = vrot.slane %v254, 4
        %v292 = vsel %vm231, %v291, %v242
        %v293 = vrot.slane %v242, 4
        %v294 = vsel %vm231, %v254, %v293
        %v296 = vunpack.c.l.s4 1934713408
        %v297 = vunpack.c.0.s8 %v296
        %v298 = vperm.slane %v292, %v297
        %v300 = vunpack.c.l.s4 1934713408
        %v301 = vunpack.c.0.s8 %v300
        %v302 = vperm.slane %v294, %v301
        %v303 = vrot.slane %v274, 4
        %v304 = vsel %vm231, %v303, %v262
        %v305 = vrot.slane %v262, 4
        %v306 = vsel %vm231, %v274, %v305
        %v308 = vunpack.c.l.s4 1934713408
        %v309 = vunpack.c.0.s8 %v308
        %v310 = vperm.slane %v304, %v309
        %v312 = vunpack.c.l.s4 1934713408
        %v313 = vunpack.c.0.s8 %v312
        %v314 = vperm.slane %v306, %v313
        %v315 = vrot.slane %v278, 4
        %v316 = vsel %vm231, %v315, %v266
        %v317 = vrot.slane %v266, 4
        %v318 = vsel %vm231, %v278, %v317
        %v320 = vunpack.c.l.s4 1934713408
        %v321 = vunpack.c.0.s8 %v320
        %v322 = vperm.slane %v316, %v321
        %v324 = vunpack.c.l.s4 1934713408
        %v325 = vunpack.c.0.s8 %v324
        %v326 = vperm.slane %v318, %v325
        %v327 = vrot.slane %v310, 4
        %v328 = vsel %vm231, %v327, %v286
        %v329 = vrot.slane %v286, 4
        %v330 = vsel %vm231, %v310, %v329
        %v331 = vrot.slane %v314, 4
        %v332 = vsel %vm231, %v331, %v290
        %v333 = vrot.slane %v290, 4
        %v334 = vsel %vm231, %v314, %v333
        %v335 = vrot.slane %v322, 4
        %v336 = vsel %vm231, %v335, %v298
        %v337 = vrot.slane %v298, 4
        %v338 = vsel %vm231, %v322, %v337
        %v339 = vrot.slane %v326, 4
        %v340 = vsel %vm231, %v339, %v302
        %v341 = vrot.slane %v302, 4
        %v342 = vsel %vm231, %v326, %v341
        %v343 = vrot.slane %v207, 4
        %v344 = vsel %vm231, %v343, %v199
        %v345 = vrot.slane %v199, 4
        %v346 = vsel %vm231, %v207, %v345
        %v348 = vunpack.c.l.s4 1983009808
        %v349 = vunpack.c.0.s8 %v348
        %v350 = vperm.slane %v344, %v349
        %v352 = vunpack.c.l.s4 1983009808
        %v353 = vunpack.c.0.s8 %v352
        %v354 = vperm.slane %v346, %v353
        %v355 = vrot.slane %v211, 4
        %v356 = vsel %vm231, %v355, %v203
        %v357 = vrot.slane %v203, 4
        %v358 = vsel %vm231, %v211, %v357
        %v360 = vunpack.c.l.s4 1983009808
        %v361 = vunpack.c.0.s8 %v360
        %v362 = vperm.slane %v356, %v361
        %v364 = vunpack.c.l.s4 1983009808
        %v365 = vunpack.c.0.s8 %v364
        %v366 = vperm.slane %v358, %v365
        %v367 = vrot.slane %v223, 4
        %v368 = vsel %vm231, %v367, %v215
        %v369 = vrot.slane %v215, 4
        %v370 = vsel %vm231, %v223, %v369
        %v372 = vunpack.c.l.s4 1983009808
        %v373 = vunpack.c.0.s8 %v372
        %v374 = vperm.slane %v368, %v373
        %v376 = vunpack.c.l.s4 1983009808
        %v377 = vunpack.c.0.s8 %v376
        %v378 = vperm.slane %v370, %v377
        %v379 = vrot.slane %v227, 4
        %v380 = vsel %vm231, %v379, %v219
        %v381 = vrot.slane %v219, 4
        %v382 = vsel %vm231, %v227, %v381
        %v384 = vunpack.c.l.s4 1983009808
        %v385 = vunpack.c.0.s8 %v384
        %v386 = vperm.slane %v380, %v385
        %v388 = vunpack.c.l.s4 1983009808
        %v389 = vunpack.c.0.s8 %v388
        %v390 = vperm.slane %v382, %v389
        %v391 = vrot.slane %v362, 4
        %v392 = vsel %vm231, %v391, %v350
        %v393 = vrot.slane %v350, 4
        %v394 = vsel %vm231, %v362, %v393
        %v396 = vunpack.c.l.s4 1934713408
        %v397 = vunpack.c.0.s8 %v396
        %v398 = vperm.slane %v392, %v397
        %v400 = vunpack.c.l.s4 1934713408
        %v401 = vunpack.c.0.s8 %v400
        %v402 = vperm.slane %v394, %v401
        %v403 = vrot.slane %v366, 4
        %v404 = vsel %vm231, %v403, %v354
        %v405 = vrot.slane %v354, 4
        %v406 = vsel %vm231, %v366, %v405
        %v408 = vunpack.c.l.s4 1934713408
        %v409 = vunpack.c.0.s8 %v408
        %v410 = vperm.slane %v404, %v409
        %v412 = vunpack.c.l.s4 1934713408
        %v413 = vunpack.c.0.s8 %v412
        %v414 = vperm.slane %v406, %v413
        %v415 = vrot.slane %v386, 4
        %v416 = vsel %vm231, %v415, %v374
        %v417 = vrot.slane %v374, 4
        %v418 = vsel %vm231, %v386, %v417
        %v420 = vunpack.c.l.s4 1934713408
        %v421 = vunpack.c.0.s8 %v420
        %v422 = vperm.slane %v416, %v421
        %v424 = vunpack.c.l.s4 1934713408
        %v425 = vunpack.c.0.s8 %v424
        %v426 = vperm.slane %v418, %v425
        %v427 = vrot.slane %v390, 4
        %v428 = vsel %vm231, %v427, %v378
        %v429 = vrot.slane %v378, 4
        %v430 = vsel %vm231, %v390, %v429
        %v432 = vunpack.c.l.s4 1934713408
        %v433 = vunpack.c.0.s8 %v432
        %v434 = vperm.slane %v428, %v433
        %v436 = vunpack.c.l.s4 1934713408
        %v437 = vunpack.c.0.s8 %v436
        %v438 = vperm.slane %v430, %v437
        %v439 = vrot.slane %v422, 4
        %v440 = vsel %vm231, %v439, %v398
        %v441 = vrot.slane %v398, 4
        %v442 = vsel %vm231, %v422, %v441
        %v443 = vrot.slane %v426, 4
        %v444 = vsel %vm231, %v443, %v402
        %v445 = vrot.slane %v402, 4
        %v446 = vsel %vm231, %v426, %v445
        %v447 = vrot.slane %v434, 4
        %v448 = vsel %vm231, %v447, %v410
        %v449 = vrot.slane %v410, 4
        %v450 = vsel %vm231, %v434, %v449
        %v451 = vrot.slane %v438, 4
        %v452 = vsel %vm231, %v451, %v414
        %v453 = vrot.slane %v414, 4
        %v454 = vsel %vm231, %v438, %v453
        %v455 = vrot.slane %v208, 4
        %v456 = vsel %vm231, %v455, %v200
        %v457 = vrot.slane %v200, 4
        %v458 = vsel %vm231, %v208, %v457
        %v460 = vunpack.c.l.s4 1983009808
        %v461 = vunpack.c.0.s8 %v460
        %v462 = vperm.slane %v456, %v461
        %v464 = vunpack.c.l.s4 1983009808
        %v465 = vunpack.c.0.s8 %v464
        %v466 = vperm.slane %v458, %v465
        %v467 = vrot.slane %v212, 4
        %v468 = vsel %vm231, %v467, %v204
        %v469 = vrot.slane %v204, 4
        %v470 = vsel %vm231, %v212, %v469
        %v472 = vunpack.c.l.s4 1983009808
        %v473 = vunpack.c.0.s8 %v472
        %v474 = vperm.slane %v468, %v473
        %v476 = vunpack.c.l.s4 1983009808
        %v477 = vunpack.c.0.s8 %v476
        %v478 = vperm.slane %v470, %v477
        %v479 = vrot.slane %v224, 4
        %v480 = vsel %vm231, %v479, %v216
        %v481 = vrot.slane %v216, 4
        %v482 = vsel %vm231, %v224, %v481
        %v484 = vunpack.c.l.s4 1983009808
        %v485 = vunpack.c.0.s8 %v484
        %v486 = vperm.slane %v480, %v485
        %v488 = vunpack.c.l.s4 1983009808
        %v489 = vunpack.c.0.s8 %v488
        %v490 = vperm.slane %v482, %v489
        %v491 = vrot.slane %v228, 4
        %v492 = vsel %vm231, %v491, %v220
        %v493 = vrot.slane %v220, 4
        %v494 = vsel %vm231, %v228, %v493
        %v496 = vunpack.c.l.s4 1983009808
        %v497 = vunpack.c.0.s8 %v496
        %v498 = vperm.slane %v492, %v497
        %v500 = vunpack.c.l.s4 1983009808
        %v501 = vunpack.c.0.s8 %v500
        %v502 = vperm.slane %v494, %v501
        %v503 = vrot.slane %v474, 4
        %v504 = vsel %vm231, %v503, %v462
        %v505 = vrot.slane %v462, 4
        %v506 = vsel %vm231, %v474, %v505
        %v508 = vunpack.c.l.s4 1934713408
        %v509 = vunpack.c.0.s8 %v508
        %v510 = vperm.slane %v504, %v509
        %v512 = vunpack.c.l.s4 1934713408
        %v513 = vunpack.c.0.s8 %v512
        %v514 = vperm.slane %v506, %v513
        %v515 = vrot.slane %v478, 4
        %v516 = vsel %vm231, %v515, %v466
        %v517 = vrot.slane %v466, 4
        %v518 = vsel %vm231, %v478, %v517
        %v520 = vunpack.c.l.s4 1934713408
        %v521 = vunpack.c.0.s8 %v520
        %v522 = vperm.slane %v516, %v521
        %v524 = vunpack.c.l.s4 1934713408
        %v525 = vunpack.c.0.s8 %v524
        %v526 = vperm.slane %v518, %v525
        %v527 = vrot.slane %v498, 4
        %v528 = vsel %vm231, %v527, %v486
        %v529 = vrot.slane %v486, 4
        %v530 = vsel %vm231, %v498, %v529
        %v532 = vunpack.c.l.s4 1934713408
        %v533 = vunpack.c.0.s8 %v532
        %v534 = vperm.slane %v528, %v533
        %v536 = vunpack.c.l.s4 1934713408
        %v537 = vunpack.c.0.s8 %v536
        %v538 = vperm.slane %v530, %v537
        %v539 = vrot.slane %v502, 4
        %v540 = vsel %vm231, %v539, %v490
        %v541 = vrot.slane %v490, 4
        %v542 = vsel %vm231, %v502, %v541
        %v544 = vunpack.c.l.s4 1934713408
        %v545 = vunpack.c.0.s8 %v544
        %v546 = vperm.slane %v540, %v545
        %v548 = vunpack.c.l.s4 1934713408
        %v549 = vunpack.c.0.s8 %v548
        %v550 = vperm.slane %v542, %v549
        %v551 = vrot.slane %v534, 4
        %v552 = vsel %vm231, %v551, %v510
        %v553 = vrot.slane %v510, 4
        %v554 = vsel %vm231, %v534, %v553
        %v555 = vrot.slane %v538, 4
        %v556 = vsel %vm231, %v555, %v514
        %v557 = vrot.slane %v514, 4
        %v558 = vsel %vm231, %v538, %v557
        %v559 = vrot.slane %v546, 4
        %v560 = vsel %vm231, %v559, %v522
        %v561 = vrot.slane %v522, 4
        %v562 = vsel %vm231, %v546, %v561
        %v563 = vrot.slane %v550, 4
        %v564 = vsel %vm231, %v563, %v526
        %v565 = vrot.slane %v526, 4
        %v566 = vsel %vm231, %v550, %v565
        %v567 = vrot.slane %v209, 4
        %v568 = vsel %vm231, %v567, %v201
        %v569 = vrot.slane %v201, 4
        %v570 = vsel %vm231, %v209, %v569
        %v572 = vunpack.c.l.s4 1983009808
        %v573 = vunpack.c.0.s8 %v572
        %v574 = vperm.slane %v568, %v573
        %v576 = vunpack.c.l.s4 1983009808
        %v577 = vunpack.c.0.s8 %v576
        %v578 = vperm.slane %v570, %v577
        %v579 = vrot.slane %v213, 4
        %v580 = vsel %vm231, %v579, %v205
        %v581 = vrot.slane %v205, 4
        %v582 = vsel %vm231, %v213, %v581
        %v584 = vunpack.c.l.s4 1983009808
        %v585 = vunpack.c.0.s8 %v584
        %v586 = vperm.slane %v580, %v585
        %v588 = vunpack.c.l.s4 1983009808
        %v589 = vunpack.c.0.s8 %v588
        %v590 = vperm.slane %v582, %v589
        %v591 = vrot.slane %v225, 4
        %v592 = vsel %vm231, %v591, %v217
        %v593 = vrot.slane %v217, 4
        %v594 = vsel %vm231, %v225, %v593
        %v596 = vunpack.c.l.s4 1983009808
        %v597 = vunpack.c.0.s8 %v596
        %v598 = vperm.slane %v592, %v597
        %v600 = vunpack.c.l.s4 1983009808
        %v601 = vunpack.c.0.s8 %v600
        %v602 = vperm.slane %v594, %v601
        %v603 = vrot.slane %v229, 4
        %v604 = vsel %vm231, %v603, %v221
        %v605 = vrot.slane %v221, 4
        %v606 = vsel %vm231, %v229, %v605
        %v608 = vunpack.c.l.s4 1983009808
        %v609 = vunpack.c.0.s8 %v608
        %v610 = vperm.slane %v604, %v609
        %v612 = vunpack.c.l.s4 1983009808
        %v613 = vunpack.c.0.s8 %v612
        %v614 = vperm.slane %v606, %v613
        %v615 = vrot.slane %v586, 4
        %v616 = vsel %vm231, %v615, %v574
        %v617 = vrot.slane %v574, 4
        %v618 = vsel %vm231, %v586, %v617
        %v620 = vunpack.c.l.s4 1934713408
        %v621 = vunpack.c.0.s8 %v620
        %v622 = vperm.slane %v616, %v621
        %v624 = vunpack.c.l.s4 1934713408
        %v625 = vunpack.c.0.s8 %v624
        %v626 = vperm.slane %v618, %v625
        %v627 = vrot.slane %v590, 4
        %v628 = vsel %vm231, %v627, %v578
        %v629 = vrot.slane %v578, 4
        %v630 = vsel %vm231, %v590, %v629
        %v632 = vunpack.c.l.s4 1934713408
        %v633 = vunpack.c.0.s8 %v632
        %v634 = vperm.slane %v628, %v633
        %v636 = vunpack.c.l.s4 1934713408
        %v637 = vunpack.c.0.s8 %v636
        %v638 = vperm.slane %v630, %v637
        %v639 = vrot.slane %v610, 4
        %v640 = vsel %vm231, %v639, %v598
        %v641 = vrot.slane %v598, 4
        %v642 = vsel %vm231, %v610, %v641
        %v644 = vunpack.c.l.s4 1934713408
        %v645 = vunpack.c.0.s8 %v644
        %v646 = vperm.slane %v640, %v645
        %v648 = vunpack.c.l.s4 1934713408
        %v649 = vunpack.c.0.s8 %v648
        %v650 = vperm.slane %v642, %v649
        %v651 = vrot.slane %v614, 4
        %v652 = vsel %vm231, %v651, %v602
        %v653 = vrot.slane %v602, 4
        %v654 = vsel %vm231, %v614, %v653
        %v656 = vunpack.c.l.s4 1934713408
        %v657 = vunpack.c.0.s8 %v656
        %v658 = vperm.slane %v652, %v657
        %v660 = vunpack.c.l.s4 1934713408
        %v661 = vunpack.c.0.s8 %v660
        %v662 = vperm.slane %v654, %v661
        %v663 = vrot.slane %v646, 4
        %v664 = vsel %vm231, %v663, %v622
        %v665 = vrot.slane %v622, 4
        %v666 = vsel %vm231, %v646, %v665
        %v667 = vrot.slane %v650, 4
        %v668 = vsel %vm231, %v667, %v626
        %v669 = vrot.slane %v626, 4
        %v670 = vsel %vm231, %v650, %v669
        %v671 = vrot.slane %v658, 4
        %v672 = vsel %vm231, %v671, %v634
        %v673 = vrot.slane %v634, 4
        %v674 = vsel %vm231, %v658, %v673
        %v675 = vrot.slane %v662, 4
        %v676 = vsel %vm231, %v675, %v638
        %v677 = vrot.slane %v638, 4
        %v678 = vsel %vm231, %v662, %v677
        %679 = vst [vmem:[%s193] sm:$0xff] %v328
        %680 = vst [vmem:[%s193 + $0x20] sm:$0xff] %v330
        %681 = vst [vmem:[%s193 + $0x40] sm:$0xff] %v332
        %682 = vst [vmem:[%s193 + $0x60] sm:$0xff] %v334
        %683 = vst [vmem:[%s193 + $0x80] sm:$0xff] %v336
        %684 = vst [vmem:[%s193 + $0xa0] sm:$0xff] %v338
        %685 = vst [vmem:[%s193 + $0xc0] sm:$0xff] %v340
        %686 = vst [vmem:[%s193 + $0xe0] sm:$0xff] %v342
        %687 = vst [vmem:[%s193 + $0x100] sm:$0xff] %v440
        %688 = vst [vmem:[%s193 + $0x120] sm:$0xff] %v442
        %689 = vst [vmem:[%s193 + $0x140] sm:$0xff] %v444
        %690 = vst [vmem:[%s193 + $0x160] sm:$0xff] %v446
        %691 = vst [vmem:[%s193 + $0x180] sm:$0xff] %v448
        %692 = vst [vmem:[%s193 + $0x1a0] sm:$0xff] %v450
        %693 = vst [vmem:[%s193 + $0x1c0] sm:$0xff] %v452
        %694 = vst [vmem:[%s193 + $0x1e0] sm:$0xff] %v454
        %695 = vst [vmem:[%s193 + $0x200] sm:$0xff] %v552
        %696 = vst [vmem:[%s193 + $0x220] sm:$0xff] %v554
        %697 = vst [vmem:[%s193 + $0x240] sm:$0xff] %v556
        %698 = vst [vmem:[%s193 + $0x260] sm:$0xff] %v558
        %699 = vst [vmem:[%s193 + $0x280] sm:$0xff] %v560
        %700 = vst [vmem:[%s193 + $0x2a0] sm:$0xff] %v562
        %701 = vst [vmem:[%s193 + $0x2c0] sm:$0xff] %v564
        %702 = vst [vmem:[%s193 + $0x2e0] sm:$0xff] %v566
        %703 = vst [vmem:[%s193 + $0x300] sm:$0xff] %v664
        %704 = vst [vmem:[%s193 + $0x320] sm:$0xff] %v666
        %705 = vst [vmem:[%s193 + $0x340] sm:$0xff] %v668
        %706 = vst [vmem:[%s193 + $0x360] sm:$0xff] %v670
        %707 = vst [vmem:[%s193 + $0x380] sm:$0xff] %v672
        %708 = vst [vmem:[%s193 + $0x3a0] sm:$0xff] %v674
        %709 = vst [vmem:[%s193 + $0x3c0] sm:$0xff] %v676
        %710 = vst [vmem:[%s193 + $0x3e0] sm:$0xff] %v678
        %s711 = scalar_lea.vmem %s174, 256 [#allocation2]
        %v712 = vld [vmem:[%s711] sm:$0xff]
        %v713 = vld [vmem:[%s711 + $0x8] sm:$0xff]
        %v714 = vld [vmem:[%s711 + $0x10] sm:$0xff]
        %v715 = vld [vmem:[%s711 + $0x18] sm:$0xff]
        %v716 = vld [vmem:[%s711 + $0x20] sm:$0xff]
        %v717 = vld [vmem:[%s711 + $0x28] sm:$0xff]
        %v718 = vld [vmem:[%s711 + $0x30] sm:$0xff]
        %v719 = vld [vmem:[%s711 + $0x38] sm:$0xff]
        %v720 = vld [vmem:[%s711 + $0x40] sm:$0xff]
        %v721 = vld [vmem:[%s711 + $0x48] sm:$0xff]
        %v722 = vld [vmem:[%s711 + $0x50] sm:$0xff]
        %v723 = vld [vmem:[%s711 + $0x58] sm:$0xff]
        %v724 = vld [vmem:[%s711 + $0x60] sm:$0xff]
        %v725 = vld [vmem:[%s711 + $0x68] sm:$0xff]
        %v726 = vld [vmem:[%s711 + $0x70] sm:$0xff]
        %v727 = vld [vmem:[%s711 + $0x78] sm:$0xff]
        %v728 = vld [vmem:[%s711 + $0x80] sm:$0xff]
        %v729 = vld [vmem:[%s711 + $0x88] sm:$0xff]
        %v730 = vld [vmem:[%s711 + $0x90] sm:$0xff]
        %v731 = vld [vmem:[%s711 + $0x98] sm:$0xff]
        %v732 = vld [vmem:[%s711 + $0xa0] sm:$0xff]
        %v733 = vld [vmem:[%s711 + $0xa8] sm:$0xff]
        %v734 = vld [vmem:[%s711 + $0xb0] sm:$0xff]
        %v735 = vld [vmem:[%s711 + $0xb8] sm:$0xff]
        %v736 = vld [vmem:[%s711 + $0xc0] sm:$0xff]
        %v737 = vld [vmem:[%s711 + $0xc8] sm:$0xff]
        %v738 = vld [vmem:[%s711 + $0xd0] sm:$0xff]
        %v739 = vld [vmem:[%s711 + $0xd8] sm:$0xff]
        %v740 = vld [vmem:[%s711 + $0xe0] sm:$0xff]
        %v741 = vld [vmem:[%s711 + $0xe8] sm:$0xff]
        %v742 = vld [vmem:[%s711 + $0xf0] sm:$0xff]
        %v743 = vld [vmem:[%s711 + $0xf8] sm:$0xff]
        %v744 = vrot.slane %v720, 4
        %v745 = vsel %vm231, %v744, %v712
        %v746 = vrot.slane %v712, 4
        %v747 = vsel %vm231, %v720, %v746
        %v749 = vunpack.c.l.s4 1983009808
        %v750 = vunpack.c.0.s8 %v749
        %v751 = vperm.slane %v745, %v750
        %v753 = vunpack.c.l.s4 1983009808
        %v754 = vunpack.c.0.s8 %v753
        %v755 = vperm.slane %v747, %v754
        %v756 = vrot.slane %v724, 4
        %v757 = vsel %vm231, %v756, %v716
        %v758 = vrot.slane %v716, 4
        %v759 = vsel %vm231, %v724, %v758
        %v761 = vunpack.c.l.s4 1983009808
        %v762 = vunpack.c.0.s8 %v761
        %v763 = vperm.slane %v757, %v762
        %v765 = vunpack.c.l.s4 1983009808
        %v766 = vunpack.c.0.s8 %v765
        %v767 = vperm.slane %v759, %v766
        %v768 = vrot.slane %v736, 4
        %v769 = vsel %vm231, %v768, %v728
        %v770 = vrot.slane %v728, 4
        %v771 = vsel %vm231, %v736, %v770
        %v773 = vunpack.c.l.s4 1983009808
        %v774 = vunpack.c.0.s8 %v773
        %v775 = vperm.slane %v769, %v774
        %v777 = vunpack.c.l.s4 1983009808
        %v778 = vunpack.c.0.s8 %v777
        %v779 = vperm.slane %v771, %v778
        %v780 = vrot.slane %v740, 4
        %v781 = vsel %vm231, %v780, %v732
        %v782 = vrot.slane %v732, 4
        %v783 = vsel %vm231, %v740, %v782
        %v785 = vunpack.c.l.s4 1983009808
        %v786 = vunpack.c.0.s8 %v785
        %v787 = vperm.slane %v781, %v786
        %v789 = vunpack.c.l.s4 1983009808
        %v790 = vunpack.c.0.s8 %v789
        %v791 = vperm.slane %v783, %v790
        %v792 = vrot.slane %v763, 4
        %v793 = vsel %vm231, %v792, %v751
        %v794 = vrot.slane %v751, 4
        %v795 = vsel %vm231, %v763, %v794
        %v797 = vunpack.c.l.s4 1934713408
        %v798 = vunpack.c.0.s8 %v797
        %v799 = vperm.slane %v793, %v798
        %v801 = vunpack.c.l.s4 1934713408
        %v802 = vunpack.c.0.s8 %v801
        %v803 = vperm.slane %v795, %v802
        %v804 = vrot.slane %v767, 4
        %v805 = vsel %vm231, %v804, %v755
        %v806 = vrot.slane %v755, 4
        %v807 = vsel %vm231, %v767, %v806
        %v809 = vunpack.c.l.s4 1934713408
        %v810 = vunpack.c.0.s8 %v809
        %v811 = vperm.slane %v805, %v810
        %v813 = vunpack.c.l.s4 1934713408
        %v814 = vunpack.c.0.s8 %v813
        %v815 = vperm.slane %v807, %v814
        %v816 = vrot.slane %v787, 4
        %v817 = vsel %vm231, %v816, %v775
        %v818 = vrot.slane %v775, 4
        %v819 = vsel %vm231, %v787, %v818
        %v821 = vunpack.c.l.s4 1934713408
        %v822 = vunpack.c.0.s8 %v821
        %v823 = vperm.slane %v817, %v822
        %v825 = vunpack.c.l.s4 1934713408
        %v826 = vunpack.c.0.s8 %v825
        %v827 = vperm.slane %v819, %v826
        %v828 = vrot.slane %v791, 4
        %v829 = vsel %vm231, %v828, %v779
        %v830 = vrot.slane %v779, 4
        %v831 = vsel %vm231, %v791, %v830
        %v833 = vunpack.c.l.s4 1934713408
        %v834 = vunpack.c.0.s8 %v833
        %v835 = vperm.slane %v829, %v834
        %v837 = vunpack.c.l.s4 1934713408
        %v838 = vunpack.c.0.s8 %v837
        %v839 = vperm.slane %v831, %v838
        %v840 = vrot.slane %v823, 4
        %v841 = vsel %vm231, %v840, %v799
        %v842 = vrot.slane %v799, 4
        %v843 = vsel %vm231, %v823, %v842
        %v844 = vrot.slane %v827, 4
        %v845 = vsel %vm231, %v844, %v803
        %v846 = vrot.slane %v803, 4
        %v847 = vsel %vm231, %v827, %v846
        %v848 = vrot.slane %v835, 4
        %v849 = vsel %vm231, %v848, %v811
        %v850 = vrot.slane %v811, 4
        %v851 = vsel %vm231, %v835, %v850
        %v852 = vrot.slane %v839, 4
        %v853 = vsel %vm231, %v852, %v815
        %v854 = vrot.slane %v815, 4
        %v855 = vsel %vm231, %v839, %v854
        %v856 = vrot.slane %v721, 4
        %v857 = vsel %vm231, %v856, %v713
        %v858 = vrot.slane %v713, 4
        %v859 = vsel %vm231, %v721, %v858
        %v861 = vunpack.c.l.s4 1983009808
        %v862 = vunpack.c.0.s8 %v861
        %v863 = vperm.slane %v857, %v862
        %v865 = vunpack.c.l.s4 1983009808
        %v866 = vunpack.c.0.s8 %v865
        %v867 = vperm.slane %v859, %v866
        %v868 = vrot.slane %v725, 4
        %v869 = vsel %vm231, %v868, %v717
        %v870 = vrot.slane %v717, 4
        %v871 = vsel %vm231, %v725, %v870
        %v873 = vunpack.c.l.s4 1983009808
        %v874 = vunpack.c.0.s8 %v873
        %v875 = vperm.slane %v869, %v874
        %v877 = vunpack.c.l.s4 1983009808
        %v878 = vunpack.c.0.s8 %v877
        %v879 = vperm.slane %v871, %v878
        %v880 = vrot.slane %v737, 4
        %v881 = vsel %vm231, %v880, %v729
        %v882 = vrot.slane %v729, 4
        %v883 = vsel %vm231, %v737, %v882
        %v885 = vunpack.c.l.s4 1983009808
        %v886 = vunpack.c.0.s8 %v885
        %v887 = vperm.slane %v881, %v886
        %v889 = vunpack.c.l.s4 1983009808
        %v890 = vunpack.c.0.s8 %v889
        %v891 = vperm.slane %v883, %v890
        %v892 = vrot.slane %v741, 4
        %v893 = vsel %vm231, %v892, %v733
        %v894 = vrot.slane %v733, 4
        %v895 = vsel %vm231, %v741, %v894
        %v897 = vunpack.c.l.s4 1983009808
        %v898 = vunpack.c.0.s8 %v897
        %v899 = vperm.slane %v893, %v898
        %v901 = vunpack.c.l.s4 1983009808
        %v902 = vunpack.c.0.s8 %v901
        %v903 = vperm.slane %v895, %v902
        %v904 = vrot.slane %v875, 4
        %v905 = vsel %vm231, %v904, %v863
        %v906 = vrot.slane %v863, 4
        %v907 = vsel %vm231, %v875, %v906
        %v909 = vunpack.c.l.s4 1934713408
        %v910 = vunpack.c.0.s8 %v909
        %v911 = vperm.slane %v905, %v910
        %v913 = vunpack.c.l.s4 1934713408
        %v914 = vunpack.c.0.s8 %v913
        %v915 = vperm.slane %v907, %v914
        %v916 = vrot.slane %v879, 4
        %v917 = vsel %vm231, %v916, %v867
        %v918 = vrot.slane %v867, 4
        %v919 = vsel %vm231, %v879, %v918
        %v921 = vunpack.c.l.s4 1934713408
        %v922 = vunpack.c.0.s8 %v921
        %v923 = vperm.slane %v917, %v922
        %v925 = vunpack.c.l.s4 1934713408
        %v926 = vunpack.c.0.s8 %v925
        %v927 = vperm.slane %v919, %v926
        %v928 = vrot.slane %v899, 4
        %v929 = vsel %vm231, %v928, %v887
        %v930 = vrot.slane %v887, 4
        %v931 = vsel %vm231, %v899, %v930
        %v933 = vunpack.c.l.s4 1934713408
        %v934 = vunpack.c.0.s8 %v933
        %v935 = vperm.slane %v929, %v934
        %v937 = vunpack.c.l.s4 1934713408
        %v938 = vunpack.c.0.s8 %v937
        %v939 = vperm.slane %v931, %v938
        %v940 = vrot.slane %v903, 4
        %v941 = vsel %vm231, %v940, %v891
        %v942 = vrot.slane %v891, 4
        %v943 = vsel %vm231, %v903, %v942
        %v945 = vunpack.c.l.s4 1934713408
        %v946 = vunpack.c.0.s8 %v945
        %v947 = vperm.slane %v941, %v946
        %v949 = vunpack.c.l.s4 1934713408
        %v950 = vunpack.c.0.s8 %v949
        %v951 = vperm.slane %v943, %v950
        %v952 = vrot.slane %v935, 4
        %v953 = vsel %vm231, %v952, %v911
        %v954 = vrot.slane %v911, 4
        %v955 = vsel %vm231, %v935, %v954
        %v956 = vrot.slane %v939, 4
        %v957 = vsel %vm231, %v956, %v915
        %v958 = vrot.slane %v915, 4
        %v959 = vsel %vm231, %v939, %v958
        %v960 = vrot.slane %v947, 4
        %v961 = vsel %vm231, %v960, %v923
        %v962 = vrot.slane %v923, 4
        %v963 = vsel %vm231, %v947, %v962
        %v964 = vrot.slane %v951, 4
        %v965 = vsel %vm231, %v964, %v927
        %v966 = vrot.slane %v927, 4
        %v967 = vsel %vm231, %v951, %v966
        %v968 = vrot.slane %v722, 4
        %v969 = vsel %vm231, %v968, %v714
        %v970 = vrot.slane %v714, 4
        %v971 = vsel %vm231, %v722, %v970
        %v973 = vunpack.c.l.s4 1983009808
        %v974 = vunpack.c.0.s8 %v973
        %v975 = vperm.slane %v969, %v974
        %v977 = vunpack.c.l.s4 1983009808
        %v978 = vunpack.c.0.s8 %v977
        %v979 = vperm.slane %v971, %v978
        %v980 = vrot.slane %v726, 4
        %v981 = vsel %vm231, %v980, %v718
        %v982 = vrot.slane %v718, 4
        %v983 = vsel %vm231, %v726, %v982
        %v985 = vunpack.c.l.s4 1983009808
        %v986 = vunpack.c.0.s8 %v985
        %v987 = vperm.slane %v981, %v986
        %v989 = vunpack.c.l.s4 1983009808
        %v990 = vunpack.c.0.s8 %v989
        %v991 = vperm.slane %v983, %v990
        %v992 = vrot.slane %v738, 4
        %v993 = vsel %vm231, %v992, %v730
        %v994 = vrot.slane %v730, 4
        %v995 = vsel %vm231, %v738, %v994
        %v997 = vunpack.c.l.s4 1983009808
        %v998 = vunpack.c.0.s8 %v997
        %v999 = vperm.slane %v993, %v998
        %v1001 = vunpack.c.l.s4 1983009808
        %v1002 = vunpack.c.0.s8 %v1001
        %v1003 = vperm.slane %v995, %v1002
        %v1004 = vrot.slane %v742, 4
        %v1005 = vsel %vm231, %v1004, %v734
        %v1006 = vrot.slane %v734, 4
        %v1007 = vsel %vm231, %v742, %v1006
        %v1009 = vunpack.c.l.s4 1983009808
        %v1010 = vunpack.c.0.s8 %v1009
        %v1011 = vperm.slane %v1005, %v1010
        %v1013 = vunpack.c.l.s4 1983009808
        %v1014 = vunpack.c.0.s8 %v1013
        %v1015 = vperm.slane %v1007, %v1014
        %v1016 = vrot.slane %v987, 4
        %v1017 = vsel %vm231, %v1016, %v975
        %v1018 = vrot.slane %v975, 4
        %v1019 = vsel %vm231, %v987, %v1018
        %v1021 = vunpack.c.l.s4 1934713408
        %v1022 = vunpack.c.0.s8 %v1021
        %v1023 = vperm.slane %v1017, %v1022
        %v1025 = vunpack.c.l.s4 1934713408
        %v1026 = vunpack.c.0.s8 %v1025
        %v1027 = vperm.slane %v1019, %v1026
        %v1028 = vrot.slane %v991, 4
        %v1029 = vsel %vm231, %v1028, %v979
        %v1030 = vrot.slane %v979, 4
        %v1031 = vsel %vm231, %v991, %v1030
        %v1033 = vunpack.c.l.s4 1934713408
        %v1034 = vunpack.c.0.s8 %v1033
        %v1035 = vperm.slane %v1029, %v1034
        %v1037 = vunpack.c.l.s4 1934713408
        %v1038 = vunpack.c.0.s8 %v1037
        %v1039 = vperm.slane %v1031, %v1038
        %v1040 = vrot.slane %v1011, 4
        %v1041 = vsel %vm231, %v1040, %v999
        %v1042 = vrot.slane %v999, 4
        %v1043 = vsel %vm231, %v1011, %v1042
        %v1045 = vunpack.c.l.s4 1934713408
        %v1046 = vunpack.c.0.s8 %v1045
        %v1047 = vperm.slane %v1041, %v1046
        %v1049 = vunpack.c.l.s4 1934713408
        %v1050 = vunpack.c.0.s8 %v1049
        %v1051 = vperm.slane %v1043, %v1050
        %v1052 = vrot.slane %v1015, 4
        %v1053 = vsel %vm231, %v1052, %v1003
        %v1054 = vrot.slane %v1003, 4
        %v1055 = vsel %vm231, %v1015, %v1054
        %v1057 = vunpack.c.l.s4 1934713408
        %v1058 = vunpack.c.0.s8 %v1057
        %v1059 = vperm.slane %v1053, %v1058
        %v1061 = vunpack.c.l.s4 1934713408
        %v1062 = vunpack.c.0.s8 %v1061
        %v1063 = vperm.slane %v1055, %v1062
        %v1064 = vrot.slane %v1047, 4
        %v1065 = vsel %vm231, %v1064, %v1023
        %v1066 = vrot.slane %v1023, 4
        %v1067 = vsel %vm231, %v1047, %v1066
        %v1068 = vrot.slane %v1051, 4
        %v1069 = vsel %vm231, %v1068, %v1027
        %v1070 = vrot.slane %v1027, 4
        %v1071 = vsel %vm231, %v1051, %v1070
        %v1072 = vrot.slane %v1059, 4
        %v1073 = vsel %vm231, %v1072, %v1035
        %v1074 = vrot.slane %v1035, 4
        %v1075 = vsel %vm231, %v1059, %v1074
        %v1076 = vrot.slane %v1063, 4
        %v1077 = vsel %vm231, %v1076, %v1039
        %v1078 = vrot.slane %v1039, 4
        %v1079 = vsel %vm231, %v1063, %v1078
        %v1080 = vrot.slane %v723, 4
        %v1081 = vsel %vm231, %v1080, %v715
        %v1082 = vrot.slane %v715, 4
        %v1083 = vsel %vm231, %v723, %v1082
        %v1085 = vunpack.c.l.s4 1983009808
        %v1086 = vunpack.c.0.s8 %v1085
        %v1087 = vperm.slane %v1081, %v1086
        %v1089 = vunpack.c.l.s4 1983009808
        %v1090 = vunpack.c.0.s8 %v1089
        %v1091 = vperm.slane %v1083, %v1090
        %v1092 = vrot.slane %v727, 4
        %v1093 = vsel %vm231, %v1092, %v719
        %v1094 = vrot.slane %v719, 4
        %v1095 = vsel %vm231, %v727, %v1094
        %v1097 = vunpack.c.l.s4 1983009808
        %v1098 = vunpack.c.0.s8 %v1097
        %v1099 = vperm.slane %v1093, %v1098
        %v1101 = vunpack.c.l.s4 1983009808
        %v1102 = vunpack.c.0.s8 %v1101
        %v1103 = vperm.slane %v1095, %v1102
        %v1104 = vrot.slane %v739, 4
        %v1105 = vsel %vm231, %v1104, %v731
        %v1106 = vrot.slane %v731, 4
        %v1107 = vsel %vm231, %v739, %v1106
        %v1109 = vunpack.c.l.s4 1983009808
        %v1110 = vunpack.c.0.s8 %v1109
        %v1111 = vperm.slane %v1105, %v1110
        %v1113 = vunpack.c.l.s4 1983009808
        %v1114 = vunpack.c.0.s8 %v1113
        %v1115 = vperm.slane %v1107, %v1114
        %v1116 = vrot.slane %v743, 4
        %v1117 = vsel %vm231, %v1116, %v735
        %v1118 = vrot.slane %v735, 4
        %v1119 = vsel %vm231, %v743, %v1118
        %v1121 = vunpack.c.l.s4 1983009808
        %v1122 = vunpack.c.0.s8 %v1121
        %v1123 = vperm.slane %v1117, %v1122
        %v1125 = vunpack.c.l.s4 1983009808
        %v1126 = vunpack.c.0.s8 %v1125
        %v1127 = vperm.slane %v1119, %v1126
        %v1128 = vrot.slane %v1099, 4
        %v1129 = vsel %vm231, %v1128, %v1087
        %v1130 = vrot.slane %v1087, 4
        %v1131 = vsel %vm231, %v1099, %v1130
        %v1133 = vunpack.c.l.s4 1934713408
        %v1134 = vunpack.c.0.s8 %v1133
        %v1135 = vperm.slane %v1129, %v1134
        %v1137 = vunpack.c.l.s4 1934713408
        %v1138 = vunpack.c.0.s8 %v1137
        %v1139 = vperm.slane %v1131, %v1138
        %v1140 = vrot.slane %v1103, 4
        %v1141 = vsel %vm231, %v1140, %v1091
        %v1142 = vrot.slane %v1091, 4
        %v1143 = vsel %vm231, %v1103, %v1142
        %v1145 = vunpack.c.l.s4 1934713408
        %v1146 = vunpack.c.0.s8 %v1145
        %v1147 = vperm.slane %v1141, %v1146
        %v1149 = vunpack.c.l.s4 1934713408
        %v1150 = vunpack.c.0.s8 %v1149
        %v1151 = vperm.slane %v1143, %v1150
        %v1152 = vrot.slane %v1123, 4
        %v1153 = vsel %vm231, %v1152, %v1111
        %v1154 = vrot.slane %v1111, 4
        %v1155 = vsel %vm231, %v1123, %v1154
        %v1157 = vunpack.c.l.s4 1934713408
        %v1158 = vunpack.c.0.s8 %v1157
        %v1159 = vperm.slane %v1153, %v1158
        %v1161 = vunpack.c.l.s4 1934713408
        %v1162 = vunpack.c.0.s8 %v1161
        %v1163 = vperm.slane %v1155, %v1162
        %v1164 = vrot.slane %v1127, 4
        %v1165 = vsel %vm231, %v1164, %v1115
        %v1166 = vrot.slane %v1115, 4
        %v1167 = vsel %vm231, %v1127, %v1166
        %v1169 = vunpack.c.l.s4 1934713408
        %v1170 = vunpack.c.0.s8 %v1169
        %v1171 = vperm.slane %v1165, %v1170
        %v1173 = vunpack.c.l.s4 1934713408
        %v1174 = vunpack.c.0.s8 %v1173
        %v1175 = vperm.slane %v1167, %v1174
        %v1176 = vrot.slane %v1159, 4
        %v1177 = vsel %vm231, %v1176, %v1135
        %v1178 = vrot.slane %v1135, 4
        %v1179 = vsel %vm231, %v1159, %v1178
        %v1180 = vrot.slane %v1163, 4
        %v1181 = vsel %vm231, %v1180, %v1139
        %v1182 = vrot.slane %v1139, 4
        %v1183 = vsel %vm231, %v1163, %v1182
        %v1184 = vrot.slane %v1171, 4
        %v1185 = vsel %vm231, %v1184, %v1147
        %v1186 = vrot.slane %v1147, 4
        %v1187 = vsel %vm231, %v1171, %v1186
        %v1188 = vrot.slane %v1175, 4
        %v1189 = vsel %vm231, %v1188, %v1151
        %v1190 = vrot.slane %v1151, 4
        %v1191 = vsel %vm231, %v1175, %v1190
        %1192 = vst [vmem:[%s193 + $0x8] sm:$0xff] %v841
        %1193 = vst [vmem:[%s193 + $0x28] sm:$0xff] %v843
        %1194 = vst [vmem:[%s193 + $0x48] sm:$0xff] %v845
        %1195 = vst [vmem:[%s193 + $0x68] sm:$0xff] %v847
        %1196 = vst [vmem:[%s193 + $0x88] sm:$0xff] %v849
        %1197 = vst [vmem:[%s193 + $0xa8] sm:$0xff] %v851
        %1198 = vst [vmem:[%s193 + $0xc8] sm:$0xff] %v853
        %1199 = vst [vmem:[%s193 + $0xe8] sm:$0xff] %v855
        %1200 = vst [vmem:[%s193 + $0x108] sm:$0xff] %v953
        %1201 = vst [vmem:[%s193 + $0x128] sm:$0xff] %v955
        %1202 = vst [vmem:[%s193 + $0x148] sm:$0xff] %v957
        %1203 = vst [vmem:[%s193 + $0x168] sm:$0xff] %v959
        %1204 = vst [vmem:[%s193 + $0x188] sm:$0xff] %v961
        %1205 = vst [vmem:[%s193 + $0x1a8] sm:$0xff] %v963
        %1206 = vst [vmem:[%s193 + $0x1c8] sm:$0xff] %v965
        %1207 = vst [vmem:[%s193 + $0x1e8] sm:$0xff] %v967
        %1208 = vst [vmem:[%s193 + $0x208] sm:$0xff] %v1065
        %1209 = vst [vmem:[%s193 + $0x228] sm:$0xff] %v1067
        %1210 = vst [vmem:[%s193 + $0x248] sm:$0xff] %v1069
        %1211 = vst [vmem:[%s193 + $0x268] sm:$0xff] %v1071
        %1212 = vst [vmem:[%s193 + $0x288] sm:$0xff] %v1073
        %1213 = vst [vmem:[%s193 + $0x2a8] sm:$0xff] %v1075
        %1214 = vst [vmem:[%s193 + $0x2c8] sm:$0xff] %v1077
        %1215 = vst [vmem:[%s193 + $0x2e8] sm:$0xff] %v1079
        %1216 = vst [vmem:[%s193 + $0x308] sm:$0xff] %v1177
        %1217 = vst [vmem:[%s193 + $0x328] sm:$0xff] %v1179
        %1218 = vst [vmem:[%s193 + $0x348] sm:$0xff] %v1181
        %1219 = vst [vmem:[%s193 + $0x368] sm:$0xff] %v1183
        %1220 = vst [vmem:[%s193 + $0x388] sm:$0xff] %v1185
        %1221 = vst [vmem:[%s193 + $0x3a8] sm:$0xff] %v1187
        %1222 = vst [vmem:[%s193 + $0x3c8] sm:$0xff] %v1189
        %1223 = vst [vmem:[%s193 + $0x3e8] sm:$0xff] %v1191
        %s1224 = scalar_lea.vmem %s174, 512 [#allocation2]
        %v1225 = vld [vmem:[%s1224] sm:$0xff]
        %v1226 = vld [vmem:[%s1224 + $0x8] sm:$0xff]
        %v1227 = vld [vmem:[%s1224 + $0x10] sm:$0xff]
        %v1228 = vld [vmem:[%s1224 + $0x18] sm:$0xff]
        %v1229 = vld [vmem:[%s1224 + $0x20] sm:$0xff]
        %v1230 = vld [vmem:[%s1224 + $0x28] sm:$0xff]
        %v1231 = vld [vmem:[%s1224 + $0x30] sm:$0xff]
        %v1232 = vld [vmem:[%s1224 + $0x38] sm:$0xff]
        %v1233 = vld [vmem:[%s1224 + $0x40] sm:$0xff]
        %v1234 = vld [vmem:[%s1224 + $0x48] sm:$0xff]
        %v1235 = vld [vmem:[%s1224 + $0x50] sm:$0xff]
        %v1236 = vld [vmem:[%s1224 + $0x58] sm:$0xff]
        %v1237 = vld [vmem:[%s1224 + $0x60] sm:$0xff]
        %v1238 = vld [vmem:[%s1224 + $0x68] sm:$0xff]
        %v1239 = vld [vmem:[%s1224 + $0x70] sm:$0xff]
        %v1240 = vld [vmem:[%s1224 + $0x78] sm:$0xff]
        %v1241 = vld [vmem:[%s1224 + $0x80] sm:$0xff]
        %v1242 = vld [vmem:[%s1224 + $0x88] sm:$0xff]
        %v1243 = vld [vmem:[%s1224 + $0x90] sm:$0xff]
        %v1244 = vld [vmem:[%s1224 + $0x98] sm:$0xff]
        %v1245 = vld [vmem:[%s1224 + $0xa0] sm:$0xff]
        %v1246 = vld [vmem:[%s1224 + $0xa8] sm:$0xff]
        %v1247 = vld [vmem:[%s1224 + $0xb0] sm:$0xff]
        %v1248 = vld [vmem:[%s1224 + $0xb8] sm:$0xff]
        %v1249 = vld [vmem:[%s1224 + $0xc0] sm:$0xff]
        %v1250 = vld [vmem:[%s1224 + $0xc8] sm:$0xff]
        %v1251 = vld [vmem:[%s1224 + $0xd0] sm:$0xff]
        %v1252 = vld [vmem:[%s1224 + $0xd8] sm:$0xff]
        %v1253 = vld [vmem:[%s1224 + $0xe0] sm:$0xff]
        %v1254 = vld [vmem:[%s1224 + $0xe8] sm:$0xff]
        %v1255 = vld [vmem:[%s1224 + $0xf0] sm:$0xff]
        %v1256 = vld [vmem:[%s1224 + $0xf8] sm:$0xff]
        %v1257 = vrot.slane %v1233, 4
        %v1258 = vsel %vm231, %v1257, %v1225
        %v1259 = vrot.slane %v1225, 4
        %v1260 = vsel %vm231, %v1233, %v1259
        %v1262 = vunpack.c.l.s4 1983009808
        %v1263 = vunpack.c.0.s8 %v1262
        %v1264 = vperm.slane %v1258, %v1263
        %v1266 = vunpack.c.l.s4 1983009808
        %v1267 = vunpack.c.0.s8 %v1266
        %v1268 = vperm.slane %v1260, %v1267
        %v1269 = vrot.slane %v1237, 4
        %v1270 = vsel %vm231, %v1269, %v1229
        %v1271 = vrot.slane %v1229, 4
        %v1272 = vsel %vm231, %v1237, %v1271
        %v1274 = vunpack.c.l.s4 1983009808
        %v1275 = vunpack.c.0.s8 %v1274
        %v1276 = vperm.slane %v1270, %v1275
        %v1278 = vunpack.c.l.s4 1983009808
        %v1279 = vunpack.c.0.s8 %v1278
        %v1280 = vperm.slane %v1272, %v1279
        %v1281 = vrot.slane %v1249, 4
        %v1282 = vsel %vm231, %v1281, %v1241
        %v1283 = vrot.slane %v1241, 4
        %v1284 = vsel %vm231, %v1249, %v1283
        %v1286 = vunpack.c.l.s4 1983009808
        %v1287 = vunpack.c.0.s8 %v1286
        %v1288 = vperm.slane %v1282, %v1287
        %v1290 = vunpack.c.l.s4 1983009808
        %v1291 = vunpack.c.0.s8 %v1290
        %v1292 = vperm.slane %v1284, %v1291
        %v1293 = vrot.slane %v1253, 4
        %v1294 = vsel %vm231, %v1293, %v1245
        %v1295 = vrot.slane %v1245, 4
        %v1296 = vsel %vm231, %v1253, %v1295
        %v1298 = vunpack.c.l.s4 1983009808
        %v1299 = vunpack.c.0.s8 %v1298
        %v1300 = vperm.slane %v1294, %v1299
        %v1302 = vunpack.c.l.s4 1983009808
        %v1303 = vunpack.c.0.s8 %v1302
        %v1304 = vperm.slane %v1296, %v1303
        %v1305 = vrot.slane %v1276, 4
        %v1306 = vsel %vm231, %v1305, %v1264
        %v1307 = vrot.slane %v1264, 4
        %v1308 = vsel %vm231, %v1276, %v1307
        %v1310 = vunpack.c.l.s4 1934713408
        %v1311 = vunpack.c.0.s8 %v1310
        %v1312 = vperm.slane %v1306, %v1311
        %v1314 = vunpack.c.l.s4 1934713408
        %v1315 = vunpack.c.0.s8 %v1314
        %v1316 = vperm.slane %v1308, %v1315
        %v1317 = vrot.slane %v1280, 4
        %v1318 = vsel %vm231, %v1317, %v1268
        %v1319 = vrot.slane %v1268, 4
        %v1320 = vsel %vm231, %v1280, %v1319
        %v1322 = vunpack.c.l.s4 1934713408
        %v1323 = vunpack.c.0.s8 %v1322
        %v1324 = vperm.slane %v1318, %v1323
        %v1326 = vunpack.c.l.s4 1934713408
        %v1327 = vunpack.c.0.s8 %v1326
        %v1328 = vperm.slane %v1320, %v1327
        %v1329 = vrot.slane %v1300, 4
        %v1330 = vsel %vm231, %v1329, %v1288
        %v1331 = vrot.slane %v1288, 4
        %v1332 = vsel %vm231, %v1300, %v1331
        %v1334 = vunpack.c.l.s4 1934713408
        %v1335 = vunpack.c.0.s8 %v1334
        %v1336 = vperm.slane %v1330, %v1335
        %v1338 = vunpack.c.l.s4 1934713408
        %v1339 = vunpack.c.0.s8 %v1338
        %v1340 = vperm.slane %v1332, %v1339
        %v1341 = vrot.slane %v1304, 4
        %v1342 = vsel %vm231, %v1341, %v1292
        %v1343 = vrot.slane %v1292, 4
        %v1344 = vsel %vm231, %v1304, %v1343
        %v1346 = vunpack.c.l.s4 1934713408
        %v1347 = vunpack.c.0.s8 %v1346
        %v1348 = vperm.slane %v1342, %v1347
        %v1350 = vunpack.c.l.s4 1934713408
        %v1351 = vunpack.c.0.s8 %v1350
        %v1352 = vperm.slane %v1344, %v1351
        %v1353 = vrot.slane %v1336, 4
        %v1354 = vsel %vm231, %v1353, %v1312
        %v1355 = vrot.slane %v1312, 4
        %v1356 = vsel %vm231, %v1336, %v1355
        %v1357 = vrot.slane %v1340, 4
        %v1358 = vsel %vm231, %v1357, %v1316
        %v1359 = vrot.slane %v1316, 4
        %v1360 = vsel %vm231, %v1340, %v1359
        %v1361 = vrot.slane %v1348, 4
        %v1362 = vsel %vm231, %v1361, %v1324
        %v1363 = vrot.slane %v1324, 4
        %v1364 = vsel %vm231, %v1348, %v1363
        %v1365 = vrot.slane %v1352, 4
        %v1366 = vsel %vm231, %v1365, %v1328
        %v1367 = vrot.slane %v1328, 4
        %v1368 = vsel %vm231, %v1352, %v1367
        %v1369 = vrot.slane %v1234, 4
        %v1370 = vsel %vm231, %v1369, %v1226
        %v1371 = vrot.slane %v1226, 4
        %v1372 = vsel %vm231, %v1234, %v1371
        %v1374 = vunpack.c.l.s4 1983009808
        %v1375 = vunpack.c.0.s8 %v1374
        %v1376 = vperm.slane %v1370, %v1375
        %v1378 = vunpack.c.l.s4 1983009808
        %v1379 = vunpack.c.0.s8 %v1378
        %v1380 = vperm.slane %v1372, %v1379
        %v1381 = vrot.slane %v1238, 4
        %v1382 = vsel %vm231, %v1381, %v1230
        %v1383 = vrot.slane %v1230, 4
        %v1384 = vsel %vm231, %v1238, %v1383
        %v1386 = vunpack.c.l.s4 1983009808
        %v1387 = vunpack.c.0.s8 %v1386
        %v1388 = vperm.slane %v1382, %v1387
        %v1390 = vunpack.c.l.s4 1983009808
        %v1391 = vunpack.c.0.s8 %v1390
        %v1392 = vperm.slane %v1384, %v1391
        %v1393 = vrot.slane %v1250, 4
        %v1394 = vsel %vm231, %v1393, %v1242
        %v1395 = vrot.slane %v1242, 4
        %v1396 = vsel %vm231, %v1250, %v1395
        %v1398 = vunpack.c.l.s4 1983009808
        %v1399 = vunpack.c.0.s8 %v1398
        %v1400 = vperm.slane %v1394, %v1399
        %v1402 = vunpack.c.l.s4 1983009808
        %v1403 = vunpack.c.0.s8 %v1402
        %v1404 = vperm.slane %v1396, %v1403
        %v1405 = vrot.slane %v1254, 4
        %v1406 = vsel %vm231, %v1405, %v1246
        %v1407 = vrot.slane %v1246, 4
        %v1408 = vsel %vm231, %v1254, %v1407
        %v1410 = vunpack.c.l.s4 1983009808
        %v1411 = vunpack.c.0.s8 %v1410
        %v1412 = vperm.slane %v1406, %v1411
        %v1414 = vunpack.c.l.s4 1983009808
        %v1415 = vunpack.c.0.s8 %v1414
        %v1416 = vperm.slane %v1408, %v1415
        %v1417 = vrot.slane %v1388, 4
        %v1418 = vsel %vm231, %v1417, %v1376
        %v1419 = vrot.slane %v1376, 4
        %v1420 = vsel %vm231, %v1388, %v1419
        %v1422 = vunpack.c.l.s4 1934713408
        %v1423 = vunpack.c.0.s8 %v1422
        %v1424 = vperm.slane %v1418, %v1423
        %v1426 = vunpack.c.l.s4 1934713408
        %v1427 = vunpack.c.0.s8 %v1426
        %v1428 = vperm.slane %v1420, %v1427
        %v1429 = vrot.slane %v1392, 4
        %v1430 = vsel %vm231, %v1429, %v1380
        %v1431 = vrot.slane %v1380, 4
        %v1432 = vsel %vm231, %v1392, %v1431
        %v1434 = vunpack.c.l.s4 1934713408
        %v1435 = vunpack.c.0.s8 %v1434
        %v1436 = vperm.slane %v1430, %v1435
        %v1438 = vunpack.c.l.s4 1934713408
        %v1439 = vunpack.c.0.s8 %v1438
        %v1440 = vperm.slane %v1432, %v1439
        %v1441 = vrot.slane %v1412, 4
        %v1442 = vsel %vm231, %v1441, %v1400
        %v1443 = vrot.slane %v1400, 4
        %v1444 = vsel %vm231, %v1412, %v1443
        %v1446 = vunpack.c.l.s4 1934713408
        %v1447 = vunpack.c.0.s8 %v1446
        %v1448 = vperm.slane %v1442, %v1447
        %v1450 = vunpack.c.l.s4 1934713408
        %v1451 = vunpack.c.0.s8 %v1450
        %v1452 = vperm.slane %v1444, %v1451
        %v1453 = vrot.slane %v1416, 4
        %v1454 = vsel %vm231, %v1453, %v1404
        %v1455 = vrot.slane %v1404, 4
        %v1456 = vsel %vm231, %v1416, %v1455
        %v1458 = vunpack.c.l.s4 1934713408
        %v1459 = vunpack.c.0.s8 %v1458
        %v1460 = vperm.slane %v1454, %v1459
        %v1462 = vunpack.c.l.s4 1934713408
        %v1463 = vunpack.c.0.s8 %v1462
        %v1464 = vperm.slane %v1456, %v1463
        %v1465 = vrot.slane %v1448, 4
        %v1466 = vsel %vm231, %v1465, %v1424
        %v1467 = vrot.slane %v1424, 4
        %v1468 = vsel %vm231, %v1448, %v1467
        %v1469 = vrot.slane %v1452, 4
        %v1470 = vsel %vm231, %v1469, %v1428
        %v1471 = vrot.slane %v1428, 4
        %v1472 = vsel %vm231, %v1452, %v1471
        %v1473 = vrot.slane %v1460, 4
        %v1474 = vsel %vm231, %v1473, %v1436
        %v1475 = vrot.slane %v1436, 4
        %v1476 = vsel %vm231, %v1460, %v1475
        %v1477 = vrot.slane %v1464, 4
        %v1478 = vsel %vm231, %v1477, %v1440
        %v1479 = vrot.slane %v1440, 4
        %v1480 = vsel %vm231, %v1464, %v1479
        %v1481 = vrot.slane %v1235, 4
        %v1482 = vsel %vm231, %v1481, %v1227
        %v1483 = vrot.slane %v1227, 4
        %v1484 = vsel %vm231, %v1235, %v1483
        %v1486 = vunpack.c.l.s4 1983009808
        %v1487 = vunpack.c.0.s8 %v1486
        %v1488 = vperm.slane %v1482, %v1487
        %v1490 = vunpack.c.l.s4 1983009808
        %v1491 = vunpack.c.0.s8 %v1490
        %v1492 = vperm.slane %v1484, %v1491
        %v1493 = vrot.slane %v1239, 4
        %v1494 = vsel %vm231, %v1493, %v1231
        %v1495 = vrot.slane %v1231, 4
        %v1496 = vsel %vm231, %v1239, %v1495
        %v1498 = vunpack.c.l.s4 1983009808
        %v1499 = vunpack.c.0.s8 %v1498
        %v1500 = vperm.slane %v1494, %v1499
        %v1502 = vunpack.c.l.s4 1983009808
        %v1503 = vunpack.c.0.s8 %v1502
        %v1504 = vperm.slane %v1496, %v1503
        %v1505 = vrot.slane %v1251, 4
        %v1506 = vsel %vm231, %v1505, %v1243
        %v1507 = vrot.slane %v1243, 4
        %v1508 = vsel %vm231, %v1251, %v1507
        %v1510 = vunpack.c.l.s4 1983009808
        %v1511 = vunpack.c.0.s8 %v1510
        %v1512 = vperm.slane %v1506, %v1511
        %v1514 = vunpack.c.l.s4 1983009808
        %v1515 = vunpack.c.0.s8 %v1514
        %v1516 = vperm.slane %v1508, %v1515
        %v1517 = vrot.slane %v1255, 4
        %v1518 = vsel %vm231, %v1517, %v1247
        %v1519 = vrot.slane %v1247, 4
        %v1520 = vsel %vm231, %v1255, %v1519
        %v1522 = vunpack.c.l.s4 1983009808
        %v1523 = vunpack.c.0.s8 %v1522
        %v1524 = vperm.slane %v1518, %v1523
        %v1526 = vunpack.c.l.s4 1983009808
        %v1527 = vunpack.c.0.s8 %v1526
        %v1528 = vperm.slane %v1520, %v1527
        %v1529 = vrot.slane %v1500, 4
        %v1530 = vsel %vm231, %v1529, %v1488
        %v1531 = vrot.slane %v1488, 4
        %v1532 = vsel %vm231, %v1500, %v1531
        %v1534 = vunpack.c.l.s4 1934713408
        %v1535 = vunpack.c.0.s8 %v1534
        %v1536 = vperm.slane %v1530, %v1535
        %v1538 = vunpack.c.l.s4 1934713408
        %v1539 = vunpack.c.0.s8 %v1538
        %v1540 = vperm.slane %v1532, %v1539
        %v1541 = vrot.slane %v1504, 4
        %v1542 = vsel %vm231, %v1541, %v1492
        %v1543 = vrot.slane %v1492, 4
        %v1544 = vsel %vm231, %v1504, %v1543
        %v1546 = vunpack.c.l.s4 1934713408
        %v1547 = vunpack.c.0.s8 %v1546
        %v1548 = vperm.slane %v1542, %v1547
        %v1550 = vunpack.c.l.s4 1934713408
        %v1551 = vunpack.c.0.s8 %v1550
        %v1552 = vperm.slane %v1544, %v1551
        %v1553 = vrot.slane %v1524, 4
        %v1554 = vsel %vm231, %v1553, %v1512
        %v1555 = vrot.slane %v1512, 4
        %v1556 = vsel %vm231, %v1524, %v1555
        %v1558 = vunpack.c.l.s4 1934713408
        %v1559 = vunpack.c.0.s8 %v1558
        %v1560 = vperm.slane %v1554, %v1559
        %v1562 = vunpack.c.l.s4 1934713408
        %v1563 = vunpack.c.0.s8 %v1562
        %v1564 = vperm.slane %v1556, %v1563
        %v1565 = vrot.slane %v1528, 4
        %v1566 = vsel %vm231, %v1565, %v1516
        %v1567 = vrot.slane %v1516, 4
        %v1568 = vsel %vm231, %v1528, %v1567
        %v1570 = vunpack.c.l.s4 1934713408
        %v1571 = vunpack.c.0.s8 %v1570
        %v1572 = vperm.slane %v1566, %v1571
        %v1574 = vunpack.c.l.s4 1934713408
        %v1575 = vunpack.c.0.s8 %v1574
        %v1576 = vperm.slane %v1568, %v1575
        %v1577 = vrot.slane %v1560, 4
        %v1578 = vsel %vm231, %v1577, %v1536
        %v1579 = vrot.slane %v1536, 4
        %v1580 = vsel %vm231, %v1560, %v1579
        %v1581 = vrot.slane %v1564, 4
        %v1582 = vsel %vm231, %v1581, %v1540
        %v1583 = vrot.slane %v1540, 4
        %v1584 = vsel %vm231, %v1564, %v1583
        %v1585 = vrot.slane %v1572, 4
        %v1586 = vsel %vm231, %v1585, %v1548
        %v1587 = vrot.slane %v1548, 4
        %v1588 = vsel %vm231, %v1572, %v1587
        %v1589 = vrot.slane %v1576, 4
        %v1590 = vsel %vm231, %v1589, %v1552
        %v1591 = vrot.slane %v1552, 4
        %v1592 = vsel %vm231, %v1576, %v1591
        %v1593 = vrot.slane %v1236, 4
        %v1594 = vsel %vm231, %v1593, %v1228
        %v1595 = vrot.slane %v1228, 4
        %v1596 = vsel %vm231, %v1236, %v1595
        %v1598 = vunpack.c.l.s4 1983009808
        %v1599 = vunpack.c.0.s8 %v1598
        %v1600 = vperm.slane %v1594, %v1599
        %v1602 = vunpack.c.l.s4 1983009808
        %v1603 = vunpack.c.0.s8 %v1602
        %v1604 = vperm.slane %v1596, %v1603
        %v1605 = vrot.slane %v1240, 4
        %v1606 = vsel %vm231, %v1605, %v1232
        %v1607 = vrot.slane %v1232, 4
        %v1608 = vsel %vm231, %v1240, %v1607
        %v1610 = vunpack.c.l.s4 1983009808
        %v1611 = vunpack.c.0.s8 %v1610
        %v1612 = vperm.slane %v1606, %v1611
        %v1614 = vunpack.c.l.s4 1983009808
        %v1615 = vunpack.c.0.s8 %v1614
        %v1616 = vperm.slane %v1608, %v1615
        %v1617 = vrot.slane %v1252, 4
        %v1618 = vsel %vm231, %v1617, %v1244
        %v1619 = vrot.slane %v1244, 4
        %v1620 = vsel %vm231, %v1252, %v1619
        %v1622 = vunpack.c.l.s4 1983009808
        %v1623 = vunpack.c.0.s8 %v1622
        %v1624 = vperm.slane %v1618, %v1623
        %v1626 = vunpack.c.l.s4 1983009808
        %v1627 = vunpack.c.0.s8 %v1626
        %v1628 = vperm.slane %v1620, %v1627
        %v1629 = vrot.slane %v1256, 4
        %v1630 = vsel %vm231, %v1629, %v1248
        %v1631 = vrot.slane %v1248, 4
        %v1632 = vsel %vm231, %v1256, %v1631
        %v1634 = vunpack.c.l.s4 1983009808
        %v1635 = vunpack.c.0.s8 %v1634
        %v1636 = vperm.slane %v1630, %v1635
        %v1638 = vunpack.c.l.s4 1983009808
        %v1639 = vunpack.c.0.s8 %v1638
        %v1640 = vperm.slane %v1632, %v1639
        %v1641 = vrot.slane %v1612, 4
        %v1642 = vsel %vm231, %v1641, %v1600
        %v1643 = vrot.slane %v1600, 4
        %v1644 = vsel %vm231, %v1612, %v1643
        %v1646 = vunpack.c.l.s4 1934713408
        %v1647 = vunpack.c.0.s8 %v1646
        %v1648 = vperm.slane %v1642, %v1647
        %v1650 = vunpack.c.l.s4 1934713408
        %v1651 = vunpack.c.0.s8 %v1650
        %v1652 = vperm.slane %v1644, %v1651
        %v1653 = vrot.slane %v1616, 4
        %v1654 = vsel %vm231, %v1653, %v1604
        %v1655 = vrot.slane %v1604, 4
        %v1656 = vsel %vm231, %v1616, %v1655
        %v1658 = vunpack.c.l.s4 1934713408
        %v1659 = vunpack.c.0.s8 %v1658
        %v1660 = vperm.slane %v1654, %v1659
        %v1662 = vunpack.c.l.s4 1934713408
        %v1663 = vunpack.c.0.s8 %v1662
        %v1664 = vperm.slane %v1656, %v1663
        %v1665 = vrot.slane %v1636, 4
        %v1666 = vsel %vm231, %v1665, %v1624
        %v1667 = vrot.slane %v1624, 4
        %v1668 = vsel %vm231, %v1636, %v1667
        %v1670 = vunpack.c.l.s4 1934713408
        %v1671 = vunpack.c.0.s8 %v1670
        %v1672 = vperm.slane %v1666, %v1671
        %v1674 = vunpack.c.l.s4 1934713408
        %v1675 = vunpack.c.0.s8 %v1674
        %v1676 = vperm.slane %v1668, %v1675
        %v1677 = vrot.slane %v1640, 4
        %v1678 = vsel %vm231, %v1677, %v1628
        %v1679 = vrot.slane %v1628, 4
        %v1680 = vsel %vm231, %v1640, %v1679
        %v1682 = vunpack.c.l.s4 1934713408
        %v1683 = vunpack.c.0.s8 %v1682
        %v1684 = vperm.slane %v1678, %v1683
        %v1686 = vunpack.c.l.s4 1934713408
        %v1687 = vunpack.c.0.s8 %v1686
        %v1688 = vperm.slane %v1680, %v1687
        %v1689 = vrot.slane %v1672, 4
        %v1690 = vsel %vm231, %v1689, %v1648
        %v1691 = vrot.slane %v1648, 4
        %v1692 = vsel %vm231, %v1672, %v1691
        %v1693 = vrot.slane %v1676, 4
        %v1694 = vsel %vm231, %v1693, %v1652
        %v1695 = vrot.slane %v1652, 4
        %v1696 = vsel %vm231, %v1676, %v1695
        %v1697 = vrot.slane %v1684, 4
        %v1698 = vsel %vm231, %v1697, %v1660
        %v1699 = vrot.slane %v1660, 4
        %v1700 = vsel %vm231, %v1684, %v1699
        %v1701 = vrot.slane %v1688, 4
        %v1702 = vsel %vm231, %v1701, %v1664
        %v1703 = vrot.slane %v1664, 4
        %v1704 = vsel %vm231, %v1688, %v1703
        %1705 = vst [vmem:[%s193 + $0x10] sm:$0xff] %v1354
        %1706 = vst [vmem:[%s193 + $0x30] sm:$0xff] %v1356
        %1707 = vst [vmem:[%s193 + $0x50] sm:$0xff] %v1358
        %1708 = vst [vmem:[%s193 + $0x70] sm:$0xff] %v1360
        %1709 = vst [vmem:[%s193 + $0x90] sm:$0xff] %v1362
        %1710 = vst [vmem:[%s193 + $0xb0] sm:$0xff] %v1364
        %1711 = vst [vmem:[%s193 + $0xd0] sm:$0xff] %v1366
        %1712 = vst [vmem:[%s193 + $0xf0] sm:$0xff] %v1368
        %1713 = vst [vmem:[%s193 + $0x110] sm:$0xff] %v1466
        %1714 = vst [vmem:[%s193 + $0x130] sm:$0xff] %v1468
        %1715 = vst [vmem:[%s193 + $0x150] sm:$0xff] %v1470
        %1716 = vst [vmem:[%s193 + $0x170] sm:$0xff] %v1472
        %1717 = vst [vmem:[%s193 + $0x190] sm:$0xff] %v1474
        %1718 = vst [vmem:[%s193 + $0x1b0] sm:$0xff] %v1476
        %1719 = vst [vmem:[%s193 + $0x1d0] sm:$0xff] %v1478
        %1720 = vst [vmem:[%s193 + $0x1f0] sm:$0xff] %v1480
        %1721 = vst [vmem:[%s193 + $0x210] sm:$0xff] %v1578
        %1722 = vst [vmem:[%s193 + $0x230] sm:$0xff] %v1580
        %1723 = vst [vmem:[%s193 + $0x250] sm:$0xff] %v1582
        %1724 = vst [vmem:[%s193 + $0x270] sm:$0xff] %v1584
        %1725 = vst [vmem:[%s193 + $0x290] sm:$0xff] %v1586
        %1726 = vst [vmem:[%s193 + $0x2b0] sm:$0xff] %v1588
        %1727 = vst [vmem:[%s193 + $0x2d0] sm:$0xff] %v1590
        %1728 = vst [vmem:[%s193 + $0x2f0] sm:$0xff] %v1592
        %1729 = vst [vmem:[%s193 + $0x310] sm:$0xff] %v1690
        %1730 = vst [vmem:[%s193 + $0x330] sm:$0xff] %v1692
        %1731 = vst [vmem:[%s193 + $0x350] sm:$0xff] %v1694
        %1732 = vst [vmem:[%s193 + $0x370] sm:$0xff] %v1696
        %1733 = vst [vmem:[%s193 + $0x390] sm:$0xff] %v1698
        %1734 = vst [vmem:[%s193 + $0x3b0] sm:$0xff] %v1700
        %1735 = vst [vmem:[%s193 + $0x3d0] sm:$0xff] %v1702
        %1736 = vst [vmem:[%s193 + $0x3f0] sm:$0xff] %v1704
        %s1737 = scalar_lea.vmem %s174, 768 [#allocation2]
        %v1738 = vld [vmem:[%s1737] sm:$0xff]
        %v1739 = vld [vmem:[%s1737 + $0x8] sm:$0xff]
        %v1740 = vld [vmem:[%s1737 + $0x10] sm:$0xff]
        %v1741 = vld [vmem:[%s1737 + $0x18] sm:$0xff]
        %v1742 = vld [vmem:[%s1737 + $0x20] sm:$0xff]
        %v1743 = vld [vmem:[%s1737 + $0x28] sm:$0xff]
        %v1744 = vld [vmem:[%s1737 + $0x30] sm:$0xff]
        %v1745 = vld [vmem:[%s1737 + $0x38] sm:$0xff]
        %v1746 = vld [vmem:[%s1737 + $0x40] sm:$0xff]
        %v1747 = vld [vmem:[%s1737 + $0x48] sm:$0xff]
        %v1748 = vld [vmem:[%s1737 + $0x50] sm:$0xff]
        %v1749 = vld [vmem:[%s1737 + $0x58] sm:$0xff]
        %v1750 = vld [vmem:[%s1737 + $0x60] sm:$0xff]
        %v1751 = vld [vmem:[%s1737 + $0x68] sm:$0xff]
        %v1752 = vld [vmem:[%s1737 + $0x70] sm:$0xff]
        %v1753 = vld [vmem:[%s1737 + $0x78] sm:$0xff]
        %v1754 = vld [vmem:[%s1737 + $0x80] sm:$0xff]
        %v1755 = vld [vmem:[%s1737 + $0x88] sm:$0xff]
        %v1756 = vld [vmem:[%s1737 + $0x90] sm:$0xff]
        %v1757 = vld [vmem:[%s1737 + $0x98] sm:$0xff]
        %v1758 = vld [vmem:[%s1737 + $0xa0] sm:$0xff]
        %v1759 = vld [vmem:[%s1737 + $0xa8] sm:$0xff]
        %v1760 = vld [vmem:[%s1737 + $0xb0] sm:$0xff]
        %v1761 = vld [vmem:[%s1737 + $0xb8] sm:$0xff]
        %v1762 = vld [vmem:[%s1737 + $0xc0] sm:$0xff]
        %v1763 = vld [vmem:[%s1737 + $0xc8] sm:$0xff]
        %v1764 = vld [vmem:[%s1737 + $0xd0] sm:$0xff]
        %v1765 = vld [vmem:[%s1737 + $0xd8] sm:$0xff]
        %v1766 = vld [vmem:[%s1737 + $0xe0] sm:$0xff]
        %v1767 = vld [vmem:[%s1737 + $0xe8] sm:$0xff]
        %v1768 = vld [vmem:[%s1737 + $0xf0] sm:$0xff]
        %v1769 = vld [vmem:[%s1737 + $0xf8] sm:$0xff]
        %v1770 = vrot.slane %v1746, 4
        %v1771 = vsel %vm231, %v1770, %v1738
        %v1772 = vrot.slane %v1738, 4
        %v1773 = vsel %vm231, %v1746, %v1772
        %v1775 = vunpack.c.l.s4 1983009808
        %v1776 = vunpack.c.0.s8 %v1775
        %v1777 = vperm.slane %v1771, %v1776
        %v1779 = vunpack.c.l.s4 1983009808
        %v1780 = vunpack.c.0.s8 %v1779
        %v1781 = vperm.slane %v1773, %v1780
        %v1782 = vrot.slane %v1750, 4
        %v1783 = vsel %vm231, %v1782, %v1742
        %v1784 = vrot.slane %v1742, 4
        %v1785 = vsel %vm231, %v1750, %v1784
        %v1787 = vunpack.c.l.s4 1983009808
        %v1788 = vunpack.c.0.s8 %v1787
        %v1789 = vperm.slane %v1783, %v1788
        %v1791 = vunpack.c.l.s4 1983009808
        %v1792 = vunpack.c.0.s8 %v1791
        %v1793 = vperm.slane %v1785, %v1792
        %v1794 = vrot.slane %v1762, 4
        %v1795 = vsel %vm231, %v1794, %v1754
        %v1796 = vrot.slane %v1754, 4
        %v1797 = vsel %vm231, %v1762, %v1796
        %v1799 = vunpack.c.l.s4 1983009808
        %v1800 = vunpack.c.0.s8 %v1799
        %v1801 = vperm.slane %v1795, %v1800
        %v1803 = vunpack.c.l.s4 1983009808
        %v1804 = vunpack.c.0.s8 %v1803
        %v1805 = vperm.slane %v1797, %v1804
        %v1806 = vrot.slane %v1766, 4
        %v1807 = vsel %vm231, %v1806, %v1758
        %v1808 = vrot.slane %v1758, 4
        %v1809 = vsel %vm231, %v1766, %v1808
        %v1811 = vunpack.c.l.s4 1983009808
        %v1812 = vunpack.c.0.s8 %v1811
        %v1813 = vperm.slane %v1807, %v1812
        %v1815 = vunpack.c.l.s4 1983009808
        %v1816 = vunpack.c.0.s8 %v1815
        %v1817 = vperm.slane %v1809, %v1816
        %v1818 = vrot.slane %v1789, 4
        %v1819 = vsel %vm231, %v1818, %v1777
        %v1820 = vrot.slane %v1777, 4
        %v1821 = vsel %vm231, %v1789, %v1820
        %v1823 = vunpack.c.l.s4 1934713408
        %v1824 = vunpack.c.0.s8 %v1823
        %v1825 = vperm.slane %v1819, %v1824
        %v1827 = vunpack.c.l.s4 1934713408
        %v1828 = vunpack.c.0.s8 %v1827
        %v1829 = vperm.slane %v1821, %v1828
        %v1830 = vrot.slane %v1793, 4
        %v1831 = vsel %vm231, %v1830, %v1781
        %v1832 = vrot.slane %v1781, 4
        %v1833 = vsel %vm231, %v1793, %v1832
        %v1835 = vunpack.c.l.s4 1934713408
        %v1836 = vunpack.c.0.s8 %v1835
        %v1837 = vperm.slane %v1831, %v1836
        %v1839 = vunpack.c.l.s4 1934713408
        %v1840 = vunpack.c.0.s8 %v1839
        %v1841 = vperm.slane %v1833, %v1840
        %v1842 = vrot.slane %v1813, 4
        %v1843 = vsel %vm231, %v1842, %v1801
        %v1844 = vrot.slane %v1801, 4
        %v1845 = vsel %vm231, %v1813, %v1844
        %v1847 = vunpack.c.l.s4 1934713408
        %v1848 = vunpack.c.0.s8 %v1847
        %v1849 = vperm.slane %v1843, %v1848
        %v1851 = vunpack.c.l.s4 1934713408
        %v1852 = vunpack.c.0.s8 %v1851
        %v1853 = vperm.slane %v1845, %v1852
        %v1854 = vrot.slane %v1817, 4
        %v1855 = vsel %vm231, %v1854, %v1805
        %v1856 = vrot.slane %v1805, 4
        %v1857 = vsel %vm231, %v1817, %v1856
        %v1859 = vunpack.c.l.s4 1934713408
        %v1860 = vunpack.c.0.s8 %v1859
        %v1861 = vperm.slane %v1855, %v1860
        %v1863 = vunpack.c.l.s4 1934713408
        %v1864 = vunpack.c.0.s8 %v1863
        %v1865 = vperm.slane %v1857, %v1864
        %v1866 = vrot.slane %v1849, 4
        %v1867 = vsel %vm231, %v1866, %v1825
        %v1868 = vrot.slane %v1825, 4
        %v1869 = vsel %vm231, %v1849, %v1868
        %v1870 = vrot.slane %v1853, 4
        %v1871 = vsel %vm231, %v1870, %v1829
        %v1872 = vrot.slane %v1829, 4
        %v1873 = vsel %vm231, %v1853, %v1872
        %v1874 = vrot.slane %v1861, 4
        %v1875 = vsel %vm231, %v1874, %v1837
        %v1876 = vrot.slane %v1837, 4
        %v1877 = vsel %vm231, %v1861, %v1876
        %v1878 = vrot.slane %v1865, 4
        %v1879 = vsel %vm231, %v1878, %v1841
        %v1880 = vrot.slane %v1841, 4
        %v1881 = vsel %vm231, %v1865, %v1880
        %v1882 = vrot.slane %v1747, 4
        %v1883 = vsel %vm231, %v1882, %v1739
        %v1884 = vrot.slane %v1739, 4
        %v1885 = vsel %vm231, %v1747, %v1884
        %v1887 = vunpack.c.l.s4 1983009808
        %v1888 = vunpack.c.0.s8 %v1887
        %v1889 = vperm.slane %v1883, %v1888
        %v1891 = vunpack.c.l.s4 1983009808
        %v1892 = vunpack.c.0.s8 %v1891
        %v1893 = vperm.slane %v1885, %v1892
        %v1894 = vrot.slane %v1751, 4
        %v1895 = vsel %vm231, %v1894, %v1743
        %v1896 = vrot.slane %v1743, 4
        %v1897 = vsel %vm231, %v1751, %v1896
        %v1899 = vunpack.c.l.s4 1983009808
        %v1900 = vunpack.c.0.s8 %v1899
        %v1901 = vperm.slane %v1895, %v1900
        %v1903 = vunpack.c.l.s4 1983009808
        %v1904 = vunpack.c.0.s8 %v1903
        %v1905 = vperm.slane %v1897, %v1904
        %v1906 = vrot.slane %v1763, 4
        %v1907 = vsel %vm231, %v1906, %v1755
        %v1908 = vrot.slane %v1755, 4
        %v1909 = vsel %vm231, %v1763, %v1908
        %v1911 = vunpack.c.l.s4 1983009808
        %v1912 = vunpack.c.0.s8 %v1911
        %v1913 = vperm.slane %v1907, %v1912
        %v1915 = vunpack.c.l.s4 1983009808
        %v1916 = vunpack.c.0.s8 %v1915
        %v1917 = vperm.slane %v1909, %v1916
        %v1918 = vrot.slane %v1767, 4
        %v1919 = vsel %vm231, %v1918, %v1759
        %v1920 = vrot.slane %v1759, 4
        %v1921 = vsel %vm231, %v1767, %v1920
        %v1923 = vunpack.c.l.s4 1983009808
        %v1924 = vunpack.c.0.s8 %v1923
        %v1925 = vperm.slane %v1919, %v1924
        %v1927 = vunpack.c.l.s4 1983009808
        %v1928 = vunpack.c.0.s8 %v1927
        %v1929 = vperm.slane %v1921, %v1928
        %v1930 = vrot.slane %v1901, 4
        %v1931 = vsel %vm231, %v1930, %v1889
        %v1932 = vrot.slane %v1889, 4
        %v1933 = vsel %vm231, %v1901, %v1932
        %v1935 = vunpack.c.l.s4 1934713408
        %v1936 = vunpack.c.0.s8 %v1935
        %v1937 = vperm.slane %v1931, %v1936
        %v1939 = vunpack.c.l.s4 1934713408
        %v1940 = vunpack.c.0.s8 %v1939
        %v1941 = vperm.slane %v1933, %v1940
        %v1942 = vrot.slane %v1905, 4
        %v1943 = vsel %vm231, %v1942, %v1893
        %v1944 = vrot.slane %v1893, 4
        %v1945 = vsel %vm231, %v1905, %v1944
        %v1947 = vunpack.c.l.s4 1934713408
        %v1948 = vunpack.c.0.s8 %v1947
        %v1949 = vperm.slane %v1943, %v1948
        %v1951 = vunpack.c.l.s4 1934713408
        %v1952 = vunpack.c.0.s8 %v1951
        %v1953 = vperm.slane %v1945, %v1952
        %v1954 = vrot.slane %v1925, 4
        %v1955 = vsel %vm231, %v1954, %v1913
        %v1956 = vrot.slane %v1913, 4
        %v1957 = vsel %vm231, %v1925, %v1956
        %v1959 = vunpack.c.l.s4 1934713408
        %v1960 = vunpack.c.0.s8 %v1959
        %v1961 = vperm.slane %v1955, %v1960
        %v1963 = vunpack.c.l.s4 1934713408
        %v1964 = vunpack.c.0.s8 %v1963
        %v1965 = vperm.slane %v1957, %v1964
        %v1966 = vrot.slane %v1929, 4
        %v1967 = vsel %vm231, %v1966, %v1917
        %v1968 = vrot.slane %v1917, 4
        %v1969 = vsel %vm231, %v1929, %v1968
        %v1971 = vunpack.c.l.s4 1934713408
        %v1972 = vunpack.c.0.s8 %v1971
        %v1973 = vperm.slane %v1967, %v1972
        %v1975 = vunpack.c.l.s4 1934713408
        %v1976 = vunpack.c.0.s8 %v1975
        %v1977 = vperm.slane %v1969, %v1976
        %v1978 = vrot.slane %v1961, 4
        %v1979 = vsel %vm231, %v1978, %v1937
        %v1980 = vrot.slane %v1937, 4
        %v1981 = vsel %vm231, %v1961, %v1980
        %v1982 = vrot.slane %v1965, 4
        %v1983 = vsel %vm231, %v1982, %v1941
        %v1984 = vrot.slane %v1941, 4
        %v1985 = vsel %vm231, %v1965, %v1984
        %v1986 = vrot.slane %v1973, 4
        %v1987 = vsel %vm231, %v1986, %v1949
        %v1988 = vrot.slane %v1949, 4
        %v1989 = vsel %vm231, %v1973, %v1988
        %v1990 = vrot.slane %v1977, 4
        %v1991 = vsel %vm231, %v1990, %v1953
        %v1992 = vrot.slane %v1953, 4
        %v1993 = vsel %vm231, %v1977, %v1992
        %v1994 = vrot.slane %v1748, 4
        %v1995 = vsel %vm231, %v1994, %v1740
        %v1996 = vrot.slane %v1740, 4
        %v1997 = vsel %vm231, %v1748, %v1996
        %v1999 = vunpack.c.l.s4 1983009808
        %v2000 = vunpack.c.0.s8 %v1999
        %v2001 = vperm.slane %v1995, %v2000
        %v2003 = vunpack.c.l.s4 1983009808
        %v2004 = vunpack.c.0.s8 %v2003
        %v2005 = vperm.slane %v1997, %v2004
        %v2006 = vrot.slane %v1752, 4
        %v2007 = vsel %vm231, %v2006, %v1744
        %v2008 = vrot.slane %v1744, 4
        %v2009 = vsel %vm231, %v1752, %v2008
        %v2011 = vunpack.c.l.s4 1983009808
        %v2012 = vunpack.c.0.s8 %v2011
        %v2013 = vperm.slane %v2007, %v2012
        %v2015 = vunpack.c.l.s4 1983009808
        %v2016 = vunpack.c.0.s8 %v2015
        %v2017 = vperm.slane %v2009, %v2016
        %v2018 = vrot.slane %v1764, 4
        %v2019 = vsel %vm231, %v2018, %v1756
        %v2020 = vrot.slane %v1756, 4
        %v2021 = vsel %vm231, %v1764, %v2020
        %v2023 = vunpack.c.l.s4 1983009808
        %v2024 = vunpack.c.0.s8 %v2023
        %v2025 = vperm.slane %v2019, %v2024
        %v2027 = vunpack.c.l.s4 1983009808
        %v2028 = vunpack.c.0.s8 %v2027
        %v2029 = vperm.slane %v2021, %v2028
        %v2030 = vrot.slane %v1768, 4
        %v2031 = vsel %vm231, %v2030, %v1760
        %v2032 = vrot.slane %v1760, 4
        %v2033 = vsel %vm231, %v1768, %v2032
        %v2035 = vunpack.c.l.s4 1983009808
        %v2036 = vunpack.c.0.s8 %v2035
        %v2037 = vperm.slane %v2031, %v2036
        %v2039 = vunpack.c.l.s4 1983009808
        %v2040 = vunpack.c.0.s8 %v2039
        %v2041 = vperm.slane %v2033, %v2040
        %v2042 = vrot.slane %v2013, 4
        %v2043 = vsel %vm231, %v2042, %v2001
        %v2044 = vrot.slane %v2001, 4
        %v2045 = vsel %vm231, %v2013, %v2044
        %v2047 = vunpack.c.l.s4 1934713408
        %v2048 = vunpack.c.0.s8 %v2047
        %v2049 = vperm.slane %v2043, %v2048
        %v2051 = vunpack.c.l.s4 1934713408
        %v2052 = vunpack.c.0.s8 %v2051
        %v2053 = vperm.slane %v2045, %v2052
        %v2054 = vrot.slane %v2017, 4
        %v2055 = vsel %vm231, %v2054, %v2005
        %v2056 = vrot.slane %v2005, 4
        %v2057 = vsel %vm231, %v2017, %v2056
        %v2059 = vunpack.c.l.s4 1934713408
        %v2060 = vunpack.c.0.s8 %v2059
        %v2061 = vperm.slane %v2055, %v2060
        %v2063 = vunpack.c.l.s4 1934713408
        %v2064 = vunpack.c.0.s8 %v2063
        %v2065 = vperm.slane %v2057, %v2064
        %v2066 = vrot.slane %v2037, 4
        %v2067 = vsel %vm231, %v2066, %v2025
        %v2068 = vrot.slane %v2025, 4
        %v2069 = vsel %vm231, %v2037, %v2068
        %v2071 = vunpack.c.l.s4 1934713408
        %v2072 = vunpack.c.0.s8 %v2071
        %v2073 = vperm.slane %v2067, %v2072
        %v2075 = vunpack.c.l.s4 1934713408
        %v2076 = vunpack.c.0.s8 %v2075
        %v2077 = vperm.slane %v2069, %v2076
        %v2078 = vrot.slane %v2041, 4
        %v2079 = vsel %vm231, %v2078, %v2029
        %v2080 = vrot.slane %v2029, 4
        %v2081 = vsel %vm231, %v2041, %v2080
        %v2083 = vunpack.c.l.s4 1934713408
        %v2084 = vunpack.c.0.s8 %v2083
        %v2085 = vperm.slane %v2079, %v2084
        %v2087 = vunpack.c.l.s4 1934713408
        %v2088 = vunpack.c.0.s8 %v2087
        %v2089 = vperm.slane %v2081, %v2088
        %v2090 = vrot.slane %v2073, 4
        %v2091 = vsel %vm231, %v2090, %v2049
        %v2092 = vrot.slane %v2049, 4
        %v2093 = vsel %vm231, %v2073, %v2092
        %v2094 = vrot.slane %v2077, 4
        %v2095 = vsel %vm231, %v2094, %v2053
        %v2096 = vrot.slane %v2053, 4
        %v2097 = vsel %vm231, %v2077, %v2096
        %v2098 = vrot.slane %v2085, 4
        %v2099 = vsel %vm231, %v2098, %v2061
        %v2100 = vrot.slane %v2061, 4
        %v2101 = vsel %vm231, %v2085, %v2100
        %v2102 = vrot.slane %v2089, 4
        %v2103 = vsel %vm231, %v2102, %v2065
        %v2104 = vrot.slane %v2065, 4
        %v2105 = vsel %vm231, %v2089, %v2104
        %v2106 = vrot.slane %v1749, 4
        %v2107 = vsel %vm231, %v2106, %v1741
        %v2108 = vrot.slane %v1741, 4
        %v2109 = vsel %vm231, %v1749, %v2108
        %v2111 = vunpack.c.l.s4 1983009808
        %v2112 = vunpack.c.0.s8 %v2111
        %v2113 = vperm.slane %v2107, %v2112
        %v2115 = vunpack.c.l.s4 1983009808
        %v2116 = vunpack.c.0.s8 %v2115
        %v2117 = vperm.slane %v2109, %v2116
        %v2118 = vrot.slane %v1753, 4
        %v2119 = vsel %vm231, %v2118, %v1745
        %v2120 = vrot.slane %v1745, 4
        %v2121 = vsel %vm231, %v1753, %v2120
        %v2123 = vunpack.c.l.s4 1983009808
        %v2124 = vunpack.c.0.s8 %v2123
        %v2125 = vperm.slane %v2119, %v2124
        %v2127 = vunpack.c.l.s4 1983009808
        %v2128 = vunpack.c.0.s8 %v2127
        %v2129 = vperm.slane %v2121, %v2128
        %v2130 = vrot.slane %v1765, 4
        %v2131 = vsel %vm231, %v2130, %v1757
        %v2132 = vrot.slane %v1757, 4
        %v2133 = vsel %vm231, %v1765, %v2132
        %v2135 = vunpack.c.l.s4 1983009808
        %v2136 = vunpack.c.0.s8 %v2135
        %v2137 = vperm.slane %v2131, %v2136
        %v2139 = vunpack.c.l.s4 1983009808
        %v2140 = vunpack.c.0.s8 %v2139
        %v2141 = vperm.slane %v2133, %v2140
        %v2142 = vrot.slane %v1769, 4
        %v2143 = vsel %vm231, %v2142, %v1761
        %v2144 = vrot.slane %v1761, 4
        %v2145 = vsel %vm231, %v1769, %v2144
        %v2147 = vunpack.c.l.s4 1983009808
        %v2148 = vunpack.c.0.s8 %v2147
        %v2149 = vperm.slane %v2143, %v2148
        %v2151 = vunpack.c.l.s4 1983009808
        %v2152 = vunpack.c.0.s8 %v2151
        %v2153 = vperm.slane %v2145, %v2152
        %v2154 = vrot.slane %v2125, 4
        %v2155 = vsel %vm231, %v2154, %v2113
        %v2156 = vrot.slane %v2113, 4
        %v2157 = vsel %vm231, %v2125, %v2156
        %v2159 = vunpack.c.l.s4 1934713408
        %v2160 = vunpack.c.0.s8 %v2159
        %v2161 = vperm.slane %v2155, %v2160
        %v2163 = vunpack.c.l.s4 1934713408
        %v2164 = vunpack.c.0.s8 %v2163
        %v2165 = vperm.slane %v2157, %v2164
        %v2166 = vrot.slane %v2129, 4
        %v2167 = vsel %vm231, %v2166, %v2117
        %v2168 = vrot.slane %v2117, 4
        %v2169 = vsel %vm231, %v2129, %v2168
        %v2171 = vunpack.c.l.s4 1934713408
        %v2172 = vunpack.c.0.s8 %v2171
        %v2173 = vperm.slane %v2167, %v2172
        %v2175 = vunpack.c.l.s4 1934713408
        %v2176 = vunpack.c.0.s8 %v2175
        %v2177 = vperm.slane %v2169, %v2176
        %v2178 = vrot.slane %v2149, 4
        %v2179 = vsel %vm231, %v2178, %v2137
        %v2180 = vrot.slane %v2137, 4
        %v2181 = vsel %vm231, %v2149, %v2180
        %v2183 = vunpack.c.l.s4 1934713408
        %v2184 = vunpack.c.0.s8 %v2183
        %v2185 = vperm.slane %v2179, %v2184
        %v2187 = vunpack.c.l.s4 1934713408
        %v2188 = vunpack.c.0.s8 %v2187
        %v2189 = vperm.slane %v2181, %v2188
        %v2190 = vrot.slane %v2153, 4
        %v2191 = vsel %vm231, %v2190, %v2141
        %v2192 = vrot.slane %v2141, 4
        %v2193 = vsel %vm231, %v2153, %v2192
        %v2195 = vunpack.c.l.s4 1934713408
        %v2196 = vunpack.c.0.s8 %v2195
        %v2197 = vperm.slane %v2191, %v2196
        %v2199 = vunpack.c.l.s4 1934713408
        %v2200 = vunpack.c.0.s8 %v2199
        %v2201 = vperm.slane %v2193, %v2200
        %v2202 = vrot.slane %v2185, 4
        %v2203 = vsel %vm231, %v2202, %v2161
        %v2204 = vrot.slane %v2161, 4
        %v2205 = vsel %vm231, %v2185, %v2204
        %v2206 = vrot.slane %v2189, 4
        %v2207 = vsel %vm231, %v2206, %v2165
        %v2208 = vrot.slane %v2165, 4
        %v2209 = vsel %vm231, %v2189, %v2208
        %v2210 = vrot.slane %v2197, 4
        %v2211 = vsel %vm231, %v2210, %v2173
        %v2212 = vrot.slane %v2173, 4
        %v2213 = vsel %vm231, %v2197, %v2212
        %v2214 = vrot.slane %v2201, 4
        %v2215 = vsel %vm231, %v2214, %v2177
        %v2216 = vrot.slane %v2177, 4
        %v2217 = vsel %vm231, %v2201, %v2216
        %2218 = vst [vmem:[%s193 + $0x18] sm:$0xff] %v1867
        %2219 = vst [vmem:[%s193 + $0x38] sm:$0xff] %v1869
        %2220 = vst [vmem:[%s193 + $0x58] sm:$0xff] %v1871
        %2221 = vst [vmem:[%s193 + $0x78] sm:$0xff] %v1873
        %2222 = vst [vmem:[%s193 + $0x98] sm:$0xff] %v1875
        %2223 = vst [vmem:[%s193 + $0xb8] sm:$0xff] %v1877
        %2224 = vst [vmem:[%s193 + $0xd8] sm:$0xff] %v1879
        %2225 = vst [vmem:[%s193 + $0xf8] sm:$0xff] %v1881
        %2226 = vst [vmem:[%s193 + $0x118] sm:$0xff] %v1979
        %2227 = vst [vmem:[%s193 + $0x138] sm:$0xff] %v1981
        %2228 = vst [vmem:[%s193 + $0x158] sm:$0xff] %v1983
        %2229 = vst [vmem:[%s193 + $0x178] sm:$0xff] %v1985
        %2230 = vst [vmem:[%s193 + $0x198] sm:$0xff] %v1987
        %2231 = vst [vmem:[%s193 + $0x1b8] sm:$0xff] %v1989
        %2232 = vst [vmem:[%s193 + $0x1d8] sm:$0xff] %v1991
        %2233 = vst [vmem:[%s193 + $0x1f8] sm:$0xff] %v1993
        %2234 = vst [vmem:[%s193 + $0x218] sm:$0xff] %v2091
        %2235 = vst [vmem:[%s193 + $0x238] sm:$0xff] %v2093
        %2236 = vst [vmem:[%s193 + $0x258] sm:$0xff] %v2095
        %2237 = vst [vmem:[%s193 + $0x278] sm:$0xff] %v2097
        %2238 = vst [vmem:[%s193 + $0x298] sm:$0xff] %v2099
        %2239 = vst [vmem:[%s193 + $0x2b8] sm:$0xff] %v2101
        %2240 = vst [vmem:[%s193 + $0x2d8] sm:$0xff] %v2103
        %2241 = vst [vmem:[%s193 + $0x2f8] sm:$0xff] %v2105
        %2242 = vst [vmem:[%s193 + $0x318] sm:$0xff] %v2203
        %2243 = vst [vmem:[%s193 + $0x338] sm:$0xff] %v2205
        %2244 = vst [vmem:[%s193 + $0x358] sm:$0xff] %v2207
        %2245 = vst [vmem:[%s193 + $0x378] sm:$0xff] %v2209
        %2246 = vst [vmem:[%s193 + $0x398] sm:$0xff] %v2211
        %2247 = vst [vmem:[%s193 + $0x3b8] sm:$0xff] %v2213
        %2248 = vst [vmem:[%s193 + $0x3d8] sm:$0xff] %v2215
        %2249 = vst [vmem:[%s193 + $0x3f8] sm:$0xff] %v2217
        %s2250 = sand.u32 %s79, 1
        %s2251 = scalar_lea.sflag [#allocation4], %s2250
        %s2252 = sand.u32 %s79, 1
        %s2253 = smul.addr %s2252, 1024
        %s2254 = scalar_lea.vmem [#allocation5], %s2253
        // Predicated region
        $region29: #{tpu_custom_call.1} parent=23 // pred_check
          %p2255 = pneg %p89
        $region30: #{tpu_custom_call.1} parent=23 // pred_check_branch
          %2257 = sbr.rel (%p2255) target = $region32
        $region31: #{tpu_custom_call.1} parent=23 // pred_region
          #allocation9 [shape = 'u32[6]{0}', space=smem, size = 0x18, scoped, tag = 'DMA stride descriptor']
          %s2258 = smul.u32 32, %s24
          %s2259 = smul.u32 4, %s25
          %2261 = vsyncadd %s2251, 0
          %s2262 = smul.addr %s2258, 8
          %s2263 = sadd.s32 %s2259, %s2262
          %s2264 = smul.addr %s23, 512
          %s2265 = sadd.s32 %s2263, %s2264
          %s2266 = smul.addr %s2265, 8
          %s2267 = scalar_lea.hbm %s1, %s2266
          %s2269 = sshll.u32 1, 14
          %s2270 = sxor.u32 4294967295, %s2269
          %s2273 = sshll.u32 7, 18
          %s2274 = sxor.u32 4294967295, %s2273
          %s2275 = sand.u32 0, %s2274
          %s2277 = sor.u32 %s2275, 0
          %s2278 = sshll.u32 %s2254, 4
          %s2279 = int_to_ptr.vmem [resolvable:$true] %s2278
          %s2280 = sshll.u32 %s2267, 4
          %s2281 = int_to_ptr.hbm [resolvable:$true] %s2280
          %2287 = sst [smem:[#allocation9]] 512
          %s2288 = scalar_lea.smem [#allocation9], 1
          %2289 = sst [smem:[%s2288]] 1024
          %s2290 = scalar_lea.smem [#allocation9], 2
          %2291 = sst [smem:[%s2290]] 4
          %s2292 = scalar_lea.smem [#allocation9], 3
          %2293 = sst [smem:[%s2292]] 128
          %s2294 = scalar_lea.smem [#allocation9], 4
          %2295 = sst [smem:[%s2294]] 128
          %s2296 = scalar_lea.smem [#allocation9], 5
          %2297 = sst [smem:[%s2296]] 8
          %2299 = dma.general %s2279, 16384, %s2281, %s2251, [#allocation8], [#allocation9], %s2277, 0
        $region32: #{tpu_custom_call.1} parent=23 // pred_fallthru
          _
      $region24: #{tpu_custom_call.1} parent=5 // pred_fallthru
        _
      %p2300 = scmp.le.s32.totalorder 2, %s13
      // Predicated region
      $region33: #{tpu_custom_call.1} parent=5 // pred_check
        %p2301 = pneg %p2300
      $region34: #{tpu_custom_call.1} parent=5 // pred_check_branch
        %2303 = sbr.rel (%p2301) target = $region36
      $region35: #{tpu_custom_call.1} parent=5 // pred_region
        %s2304 = ssub.s32 %s13, 2
        // Predicated region
        $region37: #{tpu_custom_call.1} parent=35 // pred_check
          %p2305 = pneg %p95
        $region38: #{tpu_custom_call.1} parent=35 // pred_check_branch
          %2307 = sbr.rel (%p2305) target = $region40
        $region39: #{tpu_custom_call.1} parent=35 // pred_region
          %s2308 = sand.u32 %s80, 1
          %s2309 = scalar_lea.sflag [#allocation4], %s2308
          %s2310 = sand.u32 %s80, 1
          %s2311 = smul.addr %s2310, 1024
          %s2312 = scalar_lea.vmem [#allocation5], %s2311
          %2314 = dma.done %s2309, 16384
        $region40: #{tpu_custom_call.1} parent=35 // pred_fallthru
          _
      $region36: #{tpu_custom_call.1} parent=5 // pred_fallthru
        _
    $region6: #{tpu_custom_call.1} parent=1 // loop_footer
      %s17 = sadd.s32 1, %s13
    $region7: #{tpu_custom_call.1} parent=1 // loop_footer_branch
      %12 = sbr.rel target = $region3
    $region8: #{tpu_custom_call.1} parent=1 // loop_exit
      _
    %2315 = vsyncpa [#allocation3], 1
    %s2316 = scalar_lea.sflag [#allocation3], 1
    %2317 = vsyncpa %s2316, 1
    %2318 = vsyncpa [#allocation4], 1
    %s2319 = scalar_lea.sflag [#allocation4], 1
    %2320 = vsyncpa %s2319, 1

</llo_original>
